<compile_context>
chip_gen: v7x
topology: tpu7x:2x2x1
jax: 0.10.0
libtpu: 0.0.40
codegen_flags: <defaults>
</compile_context>

<pallas_src>
import numpy as np
import jax
import jax.numpy as jnp
from jax.experimental import pallas as pl
from jax.experimental.pallas import tpu as pltpu

# ---------------- model hyper-params (from ConvE.__init__) -----------------
OUT_DIM = 200              # embedding dim
OUT_CH = 100               # conv out channels
SZ_H, SZ_W = 20, 10        # reshape spatial size (stacked -> 2*SZ_H x SZ_W)
KER = 7
FLAT_H = 2 * SZ_H - KER + 1      # 34
FLAT_W = SZ_W - KER + 1          # 4
FLAT_SZ = FLAT_H * FLAT_W * OUT_CH   # 13600
BN_EPS = 1e-5

# padded / packed sizes used by the kernels
CH_PAD = 128                       # conv channels padded 100 -> 128 (lane dense)
D_PAD = 256                        # hidden dim padded 200 -> 256 (lane dense)
KW = KER * SZ_W                    # 70: one conv "row patch" (7 rows x 10 cols)
CONV_N = FLAT_W * CH_PAD           # 512: conv output columns = j*128 + c
G = 4                              # conv output rows processed per grid step
FLAT_H_PAD = 36                    # 34 rows padded to a multiple of G


def _round_up(x, m):
    return ((x + m - 1) // m) * m


# ====== kernel A: fused conv (+bn0/bn1+relu) + FC (+bn2+relu), grouped =======
def _conv_fc_kernel(rows_ref, wbig_ref, bbig_ref, fcw_ref, fcb_ref, h_ref):
    ig = pl.program_id(1)

    @pl.when(ig == 0)
    def _():
        h_ref[...] = jnp.zeros_like(h_ref)

    part = None
    for g in range(G):                       # static unrolled group loop
        # conv output-row slab: (tile_b, 70)bf16 @ (70, 512)bf16 -> f32
        conv = jnp.dot(rows_ref[g], wbig_ref[...],
                       preferred_element_type=jnp.float32)
        act = jnp.maximum(conv + bbig_ref[...], 0.0).astype(jnp.bfloat16)
        # contract with the matching FC weight slab (512, 256) bf16
        contrib = jnp.dot(act, fcw_ref[g * CONV_N:(g + 1) * CONV_N, :],
                          preferred_element_type=jnp.float32)
        part = contrib if part is None else part + contrib
    h_ref[...] += part                       # f32 output block is the accumulator

    @pl.when(ig == pl.num_programs(1) - 1)
    def _():
        h_ref[...] = jnp.maximum(h_ref[...] + fcb_ref[...], 0.0)


def conv_fc(rows, w_big, b_big, fcw_perm, fcb, tile_b):
    n_rows, b_pad, kw = rows.shape           # (36, B_pad, 70)
    d_pad = fcw_perm.shape[1]                # 256
    nb = b_pad // tile_b
    n_groups = n_rows // G                   # 9
    return pl.pallas_call(
        _conv_fc_kernel,
        out_shape=jax.ShapeDtypeStruct((b_pad, d_pad), jnp.float32),
        grid=(nb, n_groups),
        in_specs=[
            pl.BlockSpec((G, tile_b, kw), lambda bt, ig: (ig, bt, 0)),
            pl.BlockSpec((kw, CONV_N), lambda bt, ig: (0, 0)),
            pl.BlockSpec((1, CONV_N), lambda bt, ig: (0, 0)),
            pl.BlockSpec((G * CONV_N, d_pad), lambda bt, ig: (ig, 0)),
            pl.BlockSpec((1, d_pad), lambda bt, ig: (0, 0)),
        ],
        out_specs=pl.BlockSpec((tile_b, d_pad), lambda bt, ig: (bt, 0)),
        compiler_params=pltpu.CompilerParams(
            dimension_semantics=("parallel", "arbitrary")),
    )(rows, w_big, b_big, fcw_perm, fcb)


# ====== kernel B: entity scoring (hidden @ E.T + bias, sigmoid) ==============
def _score_kernel(h_ref, et_ref, bias_ref, out_ref):
    s = jnp.dot(h_ref[...], et_ref[...], preferred_element_type=jnp.float32)
    out_ref[...] = jax.nn.sigmoid(s + bias_ref[...])


def score(hidden_bf16, e_t, ent_bias, tile_bs, tile_e):
    b_pad, d_pad = hidden_bf16.shape
    ne_pad = e_t.shape[1]
    # Entity tiles on the OUTER ("parallel", megacore-sharded) axis so the
    # entity stream is fetched exactly once; tiny hidden block re-read inside.
    return pl.pallas_call(
        _score_kernel,
        out_shape=jax.ShapeDtypeStruct((b_pad, ne_pad), jnp.float32),
        grid=(ne_pad // tile_e, b_pad // tile_bs),
        in_specs=[
            pl.BlockSpec((tile_bs, d_pad), lambda ei, bi: (bi, 0)),
            pl.BlockSpec((d_pad, tile_e), lambda ei, bi: (0, ei)),
            pl.BlockSpec((1, tile_e), lambda ei, bi: (0, ei)),
        ],
        out_specs=pl.BlockSpec((tile_bs, tile_e), lambda ei, bi: (bi, ei)),
        compiler_params=pltpu.CompilerParams(
            dimension_semantics=("parallel", "parallel")),
    )(hidden_bf16, e_t, ent_bias)


# =================== one-time parameter preparation ========================
def prepare_conve_params(params, tile_e=1024):
    """Fold BN affines / conv bias / NCHW permutation into padded, lane-dense,
    pre-transposed bf16 weights.  Call once; pass the result to conve_forward."""
    E, R, ent_bias, conv_w, conv_b, fc_w, fc_b = params
    NE = E.shape[0]
    s = np.float32(1.0 / np.sqrt(1.0 + BN_EPS))   # eval BN scale (mean=0,var=1)

    # conv weights -> (70, 512): row = u*10 + w (tap in a 7x10 row patch),
    # col = j*128 + c (output x-position j, padded channel c).  bn0*bn1 folded.
    cw = jnp.transpose(conv_w[:, 0], (1, 2, 0))                  # (7, 7, 100)
    cw = jnp.pad(cw, ((0, 0), (0, 0), (0, CH_PAD - OUT_CH)))     # (7, 7, 128)
    w_big = jnp.stack(
        [jnp.pad(cw, ((0, 0), (j, SZ_W - KER - j), (0, 0)))
         for j in range(FLAT_W)], axis=2)                        # (7, 10, 4, 128)
    w_big = ((s * s) * w_big.reshape(KW, CONV_N)).astype(jnp.bfloat16)
    b_big = jnp.tile(jnp.pad(conv_b * s, (0, CH_PAD - OUT_CH)),
                     FLAT_W).reshape(1, CONV_N)                  # (1, 512) f32

    # FC weight: permute PyTorch flatten order (c*136 + i*4 + j) into the
    # kernel's natural order (i*512 + j*128 + c), fold bn2 scale, pad dims,
    # pad the 34-row axis to 36 (zero rows) for the G=4 grouping.  bf16.
    fw = fc_w.reshape(OUT_DIM, OUT_CH, FLAT_H, FLAT_W)
    fw = jnp.transpose(fw, (2, 3, 1, 0))                         # (34, 4, 100, 200)
    fw = jnp.pad(fw, ((0, FLAT_H_PAD - FLAT_H), (0, 0),
                      (0, CH_PAD - OUT_CH), (0, D_PAD - OUT_DIM)))
    fcw_perm = (s * fw).reshape(FLAT_H_PAD * CONV_N, D_PAD).astype(jnp.bfloat16)
    fcb_p = jnp.pad(fc_b * s, (0, D_PAD - OUT_DIM)).reshape(1, D_PAD)  # f32

    # entity table: transposed + padded + bf16 once for the scoring matmul
    te = min(tile_e, _round_up(NE, 128))
    ne_pad = _round_up(NE, te)
    e_t = jnp.pad(E, ((0, ne_pad - NE), (0, D_PAD - OUT_DIM))).T.astype(jnp.bfloat16)
    bias_p = jnp.pad(ent_bias, (0, ne_pad - NE)).reshape(1, ne_pad)     # f32

    return dict(E=E, R=R, w_big=w_big, b_big=b_big, fcw_perm=fcw_perm,
                fcb=fcb_p, e_t=e_t, ent_bias=bias_p, NE=NE, tile_e=te)


# =================== full forward (thin JAX glue, hot path in Pallas) ======
def conve_forward(e1_idx, r_idx, prep):
    E, R = prep["E"], prep["R"]
    NE, tile_e = prep["NE"], prep["tile_e"]
    B = e1_idx.shape[0]

    # pad the query batch so output sublanes are dense (multiple of 8);
    # tile_b cap raised to 512 so the fcw stream is re-read fewer times.
    b_pad = _round_up(B, 8)
    tile_b = b_pad if b_pad <= 512 else 512
    b_pad = _round_up(b_pad, tile_b)
    # NOTE(v7x): when nb == 1 the only "parallel" axis of kernel A has a single
    # tile, so one TensorCore idles; kernel A is tiny vs scoring, accepted.
    e1p = jnp.pad(e1_idx, (0, b_pad - B))
    rp = jnp.pad(r_idx, (0, b_pad - B))

    # ConvE.concat: stack, transpose, reshape to (B, 40, 10)
    sub, rel = E[e1p], R[rp]                                     # (B_pad, 200)
    stk = jnp.transpose(jnp.stack([sub, rel], axis=1),
                        (0, 2, 1)).reshape(b_pad, 2 * SZ_H, SZ_W)

    # compact row-patches for the in-kernel conv matmul (bf16, padded to 36):
    # rows[i, b, u*10 + w] = stk[b, i + u, w]        -> (36, B_pad, 70)
    rows = jnp.concatenate([stk[:, u:u + FLAT_H, :] for u in range(KER)],
                           axis=-1)                              # (B_pad, 34, 70)
    rows = jnp.transpose(rows, (1, 0, 2))
    rows = jnp.pad(rows, ((0, FLAT_H_PAD - FLAT_H), (0, 0), (0, 0)))
    rows = rows.astype(jnp.bfloat16)

    hidden = conv_fc(rows, prep["w_big"], prep["b_big"],
                     prep["fcw_perm"], prep["fcb"], tile_b)      # (B_pad, 256) f32

    # score kernel batch tiling (keeps resident VMEM bounded on v7x)
    tile_bs = b_pad if b_pad <= 512 else 256                     # divides b_pad
    scores = score(hidden.astype(jnp.bfloat16), prep["e_t"],
                   prep["ent_bias"], tile_bs, tile_e)
    return scores[:B, :NE]


# =================== pure-JAX reference for verification ===================
def conve_reference(e1_idx, r_idx, params):
    E, R, ent_bias, conv_w, conv_b, fc_w, fc_b = params
    B = e1_idx.shape[0]
    bn_scale = 1.0 / np.sqrt(1.0 + BN_EPS)

    sub, rel = E[e1_idx], R[r_idx]
    stk = jnp.stack([sub, rel], axis=1)
    stk = jnp.transpose(stk, (0, 2, 1)).reshape(B, 1, 2 * SZ_H, SZ_W)
    x = stk * bn_scale
    x = jax.lax.conv_general_dilated(
        x, conv_w, window_strides=(1, 1), padding='VALID',
        dimension_numbers=('NCHW', 'OIHW', 'NCHW'))
    x = x + conv_b[None, :, None, None]
    x = jnp.maximum(x * bn_scale, 0.0)
    x = x.reshape(B, FLAT_SZ)
    h = x @ fc_w.T + fc_b
    h = jnp.maximum(h * bn_scale, 0.0)
    s = h @ E.T + ent_bias
    return jax.nn.sigmoid(s)


if __name__ == "__main__":
    num_ents = 256
    num_rels = 11
    B = 2

    key = jax.random.PRNGKey(0)
    ks = jax.random.split(key, 8)

    # deterministic synthetic parameters (shapes from ConvE.__init__)
    E = jax.random.normal(ks[0], (num_ents, OUT_DIM), jnp.float32) * \
        np.sqrt(2.0 / (num_ents + OUT_DIM))                     # xavier_normal
    R = jax.random.normal(ks[1], (num_rels * 2, OUT_DIM), jnp.float32) * \
        np.sqrt(2.0 / (num_rels * 2 + OUT_DIM))
    ent_bias = jnp.zeros((num_ents,), jnp.float32)
    conv_w = jax.random.normal(ks[2], (OUT_CH, 1, KER, KER), jnp.float32) * 0.05
    conv_b = jax.random.normal(ks[3], (OUT_CH,), jnp.float32) * 0.01
    fc_w = jax.random.normal(ks[4], (OUT_DIM, FLAT_SZ), jnp.float32) * 0.01
    fc_b = jax.random.normal(ks[5], (OUT_DIM,), jnp.float32) * 0.01

    e1_idx = jax.random.randint(ks[6], (B,), 0, num_ents)
    r_idx = jax.random.randint(ks[7], (B,), 0, 2 * num_rels)

    params = (E, R, ent_bias, conv_w, conv_b, fc_w, fc_b)

    prep = prepare_conve_params(params)          # one-time parameter prep
    out = conve_forward(e1_idx, r_idx, prep)
    out = jax.block_until_ready(out)

    ref = jax.block_until_ready(conve_reference(e1_idx, r_idx, params))
    assert out.shape == (B, num_ents)
    # bf16 weights/activations (f32 accumulation): tolerance relaxed vs f32 ref
    assert jnp.allclose(out, ref, atol=1e-2, rtol=1e-2), "mismatch vs reference"

    print("KERNEL_OK")
</pallas_src>

<mosaic_0001>
module attributes {stable_mosaic.version = 11 : i64} {
  func.func @_conv_fc_kernel(%arg0: i32, %arg1: i32, %arg2: memref<4x8x70xbf16, #tpu.memory_space<vmem>>, %arg3: memref<70x512xbf16, #tpu.memory_space<vmem>>, %arg4: memref<1x512xf32, #tpu.memory_space<vmem>>, %arg5: memref<2048x256xbf16, #tpu.memory_space<vmem>>, %arg6: memref<1x256xf32, #tpu.memory_space<vmem>>, %arg7: memref<8x256xf32, #tpu.memory_space<vmem>>) attributes {dimension_semantics = [#tpu.dimension_semantics<parallel>, #tpu.dimension_semantics<arbitrary>], iteration_bounds = array<i64: 1, 9>, scalar_prefetch = 0 : i64, scratch_operands = 0 : i64, tpu.core_type = #tpu.core_type<tc>, window_params = [{transform_indices = @transform_0, window_bounds = array<i64: 4, 8, 70>}, {pipeline_mode = #tpu.pipeline_mode<synchronous>, transform_indices = @transform_1, window_bounds = array<i64: 70, 512>}, {pipeline_mode = #tpu.pipeline_mode<synchronous>, transform_indices = @transform_2, window_bounds = array<i64: 1, 512>}, {transform_indices = @transform_3, window_bounds = array<i64: 2048, 256>}, {pipeline_mode = #tpu.pipeline_mode<synchronous>, transform_indices = @transform_4, window_bounds = array<i64: 1, 256>}, {transform_indices = @transform_5, window_bounds = array<i64: 8, 256>}]} {
    %c0_i32 = arith.constant 0 : i32
    %0 = arith.cmpi eq, %arg1, %c0_i32 : i32
    %1 = arith.extui %0 : i1 to i32
    %c0_i32_0 = arith.constant 0 : i32
    %2 = arith.cmpi ne, %1, %c0_i32_0 : i32
    scf.if %2 {
      %cst_46 = arith.constant 0.000000e+00 : f32
      %60 = vector.broadcast %cst_46 : f32 to vector<8x256xf32>
      %c0_47 = arith.constant 0 : index
      %c0_48 = arith.constant 0 : index
      %61 = vector.load %arg7[%c0_47, %c0_48] : memref<8x256xf32, #tpu.memory_space<vmem>>, vector<8x256xf32>
      tpu.vector_store %arg7[%c0_47, %c0_48], %60 {strides = array<i32>} : memref<8x256xf32, #tpu.memory_space<vmem>>, vector<8x256xf32>,
    } else {
    }
    %c0 = arith.constant 0 : index
    %c0_1 = arith.constant 0 : index
    %c0_2 = arith.constant 0 : index
    %3 = vector.load %arg2[%c0, %c0_1, %c0_2] : memref<4x8x70xbf16, #tpu.memory_space<vmem>>, vector<1x8x70xbf16>
    %4 = vector.shape_cast %3 : vector<1x8x70xbf16> to vector<8x70xbf16>
    %c0_3 = arith.constant 0 : index
    %c0_4 = arith.constant 0 : index
    %5 = vector.load %arg3[%c0_3, %c0_4] : memref<70x512xbf16, #tpu.memory_space<vmem>>, vector<70x512xbf16>
    %cst = arith.constant dense<0.000000e+00> : vector<8x512xf32>
    %6 = tpu.matmul %4, %5, %cst {dimension_numbers = #tpu.dot_dimension_numbers<[1], [0], [0], [1], [0, 0, 1, 1], [], []>} : vector<8x70xbf16>, vector<70x512xbf16>, vector<8x512xf32> -> vector<8x512xf32>
    %c0_5 = arith.constant 0 : index
    %c0_6 = arith.constant 0 : index
    %7 = vector.load %arg4[%c0_5, %c0_6] : memref<1x512xf32, #tpu.memory_space<vmem>>, vector<1x512xf32>
    %8 = vector.broadcast %7 : vector<1x512xf32> to vector<8x512xf32>
    %9 = arith.addf %6, %8 : vector<8x512xf32>
    %cst_7 = arith.constant 0.000000e+00 : f32
    %10 = vector.broadcast %cst_7 : f32 to vector<8x512xf32>
    %11 = arith.maximumf %9, %10 : vector<8x512xf32>
    %12 = arith.truncf %11 : vector<8x512xf32> to vector<8x512xbf16>
    %c0_8 = arith.constant 0 : index
    %c0_9 = arith.constant 0 : index
    %13 = vector.load %arg5[%c0_8, %c0_9] : memref<2048x256xbf16, #tpu.memory_space<vmem>>, vector<512x256xbf16>
    %cst_10 = arith.constant dense<0.000000e+00> : vector<8x256xf32>
    %14 = tpu.matmul %12, %13, %cst_10 {dimension_numbers = #tpu.dot_dimension_numbers<[1], [0], [0], [1], [0, 0, 1, 1], [], []>} : vector<8x512xbf16>, vector<512x256xbf16>, vector<8x256xf32> -> vector<8x256xf32>
    %c1 = arith.constant 1 : index
    %c0_11 = arith.constant 0 : index
    %c0_12 = arith.constant 0 : index
    %15 = vector.load %arg2[%c1, %c0_11, %c0_12] : memref<4x8x70xbf16, #tpu.memory_space<vmem>>, vector<1x8x70xbf16>
    %16 = vector.shape_cast %15 : vector<1x8x70xbf16> to vector<8x70xbf16>
    %c0_13 = arith.constant 0 : index
    %c0_14 = arith.constant 0 : index
    %17 = vector.load %arg3[%c0_13, %c0_14] : memref<70x512xbf16, #tpu.memory_space<vmem>>, vector<70x512xbf16>
    %cst_15 = arith.constant dense<0.000000e+00> : vector<8x512xf32>
    %18 = tpu.matmul %16, %17, %cst_15 {dimension_numbers = #tpu.dot_dimension_numbers<[1], [0], [0], [1], [0, 0, 1, 1], [], []>} : vector<8x70xbf16>, vector<70x512xbf16>, vector<8x512xf32> -> vector<8x512xf32>
    %c0_16 = arith.constant 0 : index
    %c0_17 = arith.constant 0 : index
    %19 = vector.load %arg4[%c0_16, %c0_17] : memref<1x512xf32, #tpu.memory_space<vmem>>, vector<1x512xf32>
    %20 = vector.broadcast %19 : vector<1x512xf32> to vector<8x512xf32>
    %21 = arith.addf %18, %20 : vector<8x512xf32>
    %cst_18 = arith.constant 0.000000e+00 : f32
    %22 = vector.broadcast %cst_18 : f32 to vector<8x512xf32>
    %23 = arith.maximumf %21, %22 : vector<8x512xf32>
    %24 = arith.truncf %23 : vector<8x512xf32> to vector<8x512xbf16>
    %c512 = arith.constant 512 : index
    %c0_19 = arith.constant 0 : index
    %25 = vector.load %arg5[%c512, %c0_19] : memref<2048x256xbf16, #tpu.memory_space<vmem>>, vector<512x256xbf16>
    %cst_20 = arith.constant dense<0.000000e+00> : vector<8x256xf32>
    %26 = tpu.matmul %24, %25, %cst_20 {dimension_numbers = #tpu.dot_dimension_numbers<[1], [0], [0], [1], [0, 0, 1, 1], [], []>} : vector<8x512xbf16>, vector<512x256xbf16>, vector<8x256xf32> -> vector<8x256xf32>
    %27 = arith.addf %14, %26 : vector<8x256xf32>
    %c2 = arith.constant 2 : index
    %c0_21 = arith.constant 0 : index
    %c0_22 = arith.constant 0 : index
    %28 = vector.load %arg2[%c2, %c0_21, %c0_22] : memref<4x8x70xbf16, #tpu.memory_space<vmem>>, vector<1x8x70xbf16>
    %29 = vector.shape_cast %28 : vector<1x8x70xbf16> to vector<8x70xbf16>
    %c0_23 = arith.constant 0 : index
    %c0_24 = arith.constant 0 : index
    %30 = vector.load %arg3[%c0_23, %c0_24] : memref<70x512xbf16, #tpu.memory_space<vmem>>, vector<70x512xbf16>
    %cst_25 = arith.constant dense<0.000000e+00> : vector<8x512xf32>
    %31 = tpu.matmul %29, %30, %cst_25 {dimension_numbers = #tpu.dot_dimension_numbers<[1], [0], [0], [1], [0, 0, 1, 1], [], []>} : vector<8x70xbf16>, vector<70x512xbf16>, vector<8x512xf32> -> vector<8x512xf32>
    %c0_26 = arith.constant 0 : index
    %c0_27 = arith.constant 0 : index
    %32 = vector.load %arg4[%c0_26, %c0_27] : memref<1x512xf32, #tpu.memory_space<vmem>>, vector<1x512xf32>
    %33 = vector.broadcast %32 : vector<1x512xf32> to vector<8x512xf32>
    %34 = arith.addf %31, %33 : vector<8x512xf32>
    %cst_28 = arith.constant 0.000000e+00 : f32
    %35 = vector.broadcast %cst_28 : f32 to vector<8x512xf32>
    %36 = arith.maximumf %34, %35 : vector<8x512xf32>
    %37 = arith.truncf %36 : vector<8x512xf32> to vector<8x512xbf16>
    %c1024 = arith.constant 1024 : index
    %c0_29 = arith.constant 0 : index
    %38 = vector.load %arg5[%c1024, %c0_29] : memref<2048x256xbf16, #tpu.memory_space<vmem>>, vector<512x256xbf16>
    %cst_30 = arith.constant dense<0.000000e+00> : vector<8x256xf32>
    %39 = tpu.matmul %37, %38, %cst_30 {dimension_numbers = #tpu.dot_dimension_numbers<[1], [0], [0], [1], [0, 0, 1, 1], [], []>} : vector<8x512xbf16>, vector<512x256xbf16>, vector<8x256xf32> -> vector<8x256xf32>
    %40 = arith.addf %27, %39 : vector<8x256xf32>
    %c3 = arith.constant 3 : index
    %c0_31 = arith.constant 0 : index
    %c0_32 = arith.constant 0 : index
    %41 = vector.load %arg2[%c3, %c0_31, %c0_32] : memref<4x8x70xbf16, #tpu.memory_space<vmem>>, vector<1x8x70xbf16>
    %42 = vector.shape_cast %41 : vector<1x8x70xbf16> to vector<8x70xbf16>
    %c0_33 = arith.constant 0 : index
    %c0_34 = arith.constant 0 : index
    %43 = vector.load %arg3[%c0_33, %c0_34] : memref<70x512xbf16, #tpu.memory_space<vmem>>, vector<70x512xbf16>
    %cst_35 = arith.constant dense<0.000000e+00> : vector<8x512xf32>
    %44 = tpu.matmul %42, %43, %cst_35 {dimension_numbers = #tpu.dot_dimension_numbers<[1], [0], [0], [1], [0, 0, 1, 1], [], []>} : vector<8x70xbf16>, vector<70x512xbf16>, vector<8x512xf32> -> vector<8x512xf32>
    %c0_36 = arith.constant 0 : index
    %c0_37 = arith.constant 0 : index
    %45 = vector.load %arg4[%c0_36, %c0_37] : memref<1x512xf32, #tpu.memory_space<vmem>>, vector<1x512xf32>
    %46 = vector.broadcast %45 : vector<1x512xf32> to vector<8x512xf32>
    %47 = arith.addf %44, %46 : vector<8x512xf32>
    %cst_38 = arith.constant 0.000000e+00 : f32
    %48 = vector.broadcast %cst_38 : f32 to vector<8x512xf32>
    %49 = arith.maximumf %47, %48 : vector<8x512xf32>
    %50 = arith.truncf %49 : vector<8x512xf32> to vector<8x512xbf16>
    %c1536 = arith.constant 1536 : index
    %c0_39 = arith.constant 0 : index
    %51 = vector.load %arg5[%c1536, %c0_39] : memref<2048x256xbf16, #tpu.memory_space<vmem>>, vector<512x256xbf16>
    %cst_40 = arith.constant dense<0.000000e+00> : vector<8x256xf32>
    %52 = tpu.matmul %50, %51, %cst_40 {dimension_numbers = #tpu.dot_dimension_numbers<[1], [0], [0], [1], [0, 0, 1, 1], [], []>} : vector<8x512xbf16>, vector<512x256xbf16>, vector<8x256xf32> -> vector<8x256xf32>
    %53 = arith.addf %40, %52 : vector<8x256xf32>
    %c0_41 = arith.constant 0 : index
    %c0_42 = arith.constant 0 : index
    %54 = vector.load %arg7[%c0_41, %c0_42] : memref<8x256xf32, #tpu.memory_space<vmem>>, vector<8x256xf32>
    %55 = arith.addf %54, %53 : vector<8x256xf32>
    %c0_43 = arith.constant 0 : index
    %c0_44 = arith.constant 0 : index
    %56 = vector.load %arg7[%c0_43, %c0_44] : memref<8x256xf32, #tpu.memory_space<vmem>>, vector<8x256xf32>
    tpu.vector_store %arg7[%c0_43, %c0_44], %55 {strides = array<i32>} : memref<8x256xf32, #tpu.memory_space<vmem>>, vector<8x256xf32>,
    %c8_i32 = arith.constant 8 : i32
    %57 = arith.cmpi eq, %arg1, %c8_i32 : i32
    %58 = arith.extui %57 : i1 to i32
    %c0_i32_45 = arith.constant 0 : i32
    %59 = arith.cmpi ne, %58, %c0_i32_45 : i32
    scf.if %59 {
      %c0_46 = arith.constant 0 : index
      %c0_47 = arith.constant 0 : index
      %60 = vector.load %arg7[%c0_46, %c0_47] : memref<8x256xf32, #tpu.memory_space<vmem>>, vector<8x256xf32>
      %c0_48 = arith.constant 0 : index
      %c0_49 = arith.constant 0 : index
      %61 = vector.load %arg6[%c0_48, %c0_49] : memref<1x256xf32, #tpu.memory_space<vmem>>, vector<1x256xf32>
      %62 = vector.broadcast %61 : vector<1x256xf32> to vector<8x256xf32>
      %63 = arith.addf %60, %62 : vector<8x256xf32>
      %cst_50 = arith.constant 0.000000e+00 : f32
      %64 = vector.broadcast %cst_50 : f32 to vector<8x256xf32>
      %65 = arith.maximumf %63, %64 : vector<8x256xf32>
      %c0_51 = arith.constant 0 : index
      %c0_52 = arith.constant 0 : index
      %66 = vector.load %arg7[%c0_51, %c0_52] : memref<8x256xf32, #tpu.memory_space<vmem>>, vector<8x256xf32>
      tpu.vector_store %arg7[%c0_51, %c0_52], %65 {strides = array<i32>} : memref<8x256xf32, #tpu.memory_space<vmem>>, vector<8x256xf32>,
    } else {
    }
    return
  }
  func.func @transform_0(%arg0: i32, %arg1: i32) -> (i32, i32, i32) {
    %c0_i32 = arith.constant 0 : i32
    %c0_i32_0 = arith.constant 0 : i32
    return %arg1, %arg0, %c0_i32 : i32, i32, i32
  }
  func.func @transform_1(%arg0: i32, %arg1: i32) -> (i32, i32) {
    %c0_i32 = arith.constant 0 : i32
    %c0_i32_0 = arith.constant 0 : i32
    %c0_i32_1 = arith.constant 0 : i32
    return %c0_i32, %c0_i32_0 : i32, i32
  }
  func.func @transform_2(%arg0: i32, %arg1: i32) -> (i32, i32) {
    %c0_i32 = arith.constant 0 : i32
    %c0_i32_0 = arith.constant 0 : i32
    %c0_i32_1 = arith.constant 0 : i32
    return %c0_i32, %c0_i32_0 : i32, i32
  }
  func.func @transform_3(%arg0: i32, %arg1: i32) -> (i32, i32) {
    %c0_i32 = arith.constant 0 : i32
    %c0_i32_0 = arith.constant 0 : i32
    return %arg1, %c0_i32 : i32, i32
  }
  func.func @transform_4(%arg0: i32, %arg1: i32) -> (i32, i32) {
    %c0_i32 = arith.constant 0 : i32
    %c0_i32_0 = arith.constant 0 : i32
    %c0_i32_1 = arith.constant 0 : i32
    return %c0_i32, %c0_i32_0 : i32, i32
  }
  func.func @transform_5(%arg0: i32, %arg1: i32) -> (i32, i32) {
    %c0_i32 = arith.constant 0 : i32
    %c0_i32_0 = arith.constant 0 : i32
    return %arg0, %c0_i32 : i32, i32
  }
}

</mosaic_0001>

<llo_original>
// kernel: tpu_custom_call.1
$region0: #{tpu_custom_call.1}
  #allocation0 [shape = 'u32[]', space=smem, size = 0x4, offset = 0x4, fixed_abs, tag = 'smem constant byte address 0x4 - core index']
  #allocation1 [shape = 'u32[144,128]{1,0:T(1,128)}', space=vmem, size = 0x12000, scoped, tag = 'internal scratch']
  %s0 = inlined_call_operand.hbm [shape: bf16[36,8,70], index: 0, kind: input, shape index: {}]
  %s1 = inlined_call_operand.hbm [shape: bf16[70,512], index: 1, kind: input, shape index: {}]
  %s2 = inlined_call_operand.hbm [shape: f32[1,512], index: 2, kind: input, shape index: {}]
  %s3 = inlined_call_operand.hbm [shape: bf16[18432,256], index: 3, kind: input, shape index: {}]
  %s4 = inlined_call_operand.hbm [shape: f32[1,256], index: 4, kind: input, shape index: {}]
  %s5 = inlined_call_operand.hbm [shape: f32[8,256], index: 5, kind: output, shape index: {}]
  %s6 = sld [smem:[#allocation0]]
  $region81: #{tpu_custom_call.1} parent=0
    _
  %s8 = ssub.s32 1, %s6
  %s9 = scalar_select 0, %s8, %s6
  $region1: #{tpu_custom_call.1} parent=0
    #allocation2 [shape = 'u8[16384]{0}', space=vmem, size = 0x4000, scoped, tag = 'input window, operand 0']
    #allocation3 [shape = 's32[2]{0}', space=sflag, size = 0x8, scoped, tag = 'scoped memory for tpu_custom_call.1']
    #allocation4 [shape = 's32[2]{0}', space=sflag, size = 0x8, scoped, tag = 'scoped memory for tpu_custom_call.1']
    #allocation5 [shape = 'u8[73728]{0}', space=vmem, size = 0x12000, scoped, tag = 'input window, operand 1, single buffered']
    #allocation6 [shape = 's32[1]{0}', space=sflag, size = 0x4, scoped, tag = 'scoped memory for tpu_custom_call.1']
    #allocation7 [shape = 'u8[2048]{0}', space=vmem, size = 0x800, scoped, tag = 'input window, operand 2, single buffered']
    #allocation8 [shape = 'u8[2097152]{0}', space=vmem, size = 0x200000, scoped, tag = 'input window, operand 3']
    #allocation9 [shape = 's32[2]{0}', space=sflag, size = 0x8, scoped, tag = 'scoped memory for tpu_custom_call.1']
    #allocation10 [shape = 'u8[1024]{0}', space=vmem, size = 0x400, scoped, tag = 'input window, operand 4, single buffered']
    #allocation11 [shape = 'u8[8192]{0}', space=vmem, size = 0x2000, scoped, tag = 'output window, operand 0, single buffered']
    %10 = vsyncpa [#allocation3], 0
    %s11 = scalar_lea.sflag [#allocation3], 1
    %12 = vsyncpa %s11, 0
    %13 = vsyncpa [#allocation6], 0
    %14 = vsyncpa [#allocation9], 0
    %s15 = scalar_lea.sflag [#allocation9], 1
    %16 = vsyncpa %s15, 0
    %17 = vsyncpa [#allocation4], 0
    loop: start=0, step=1, limit=11
    $region2: #{tpu_custom_call.1} parent=1 // loop_pre_header
      _
    $region3: #{tpu_custom_call.1} parent=1 // loop_header
      %s19 = sphi 0, %s23
      %p20 = scmp.ge.s32.totalorder %s19, 11
      %s26 = sphi 0, %s38
      %s27 = sphi 0, %s34
      %s28 = sphi 0, %s26
      %s29 = sphi 0, %s27
      %s30 = sphi 0, %s28
      %s31 = sphi 0, %s29
      %s43 = sphi 0, %s45
      %s46 = sphi 0, %s43
      %s47 = sphi 0, %s46
      %s63 = sphi 0, %s47
      %s67 = sphi 0, %s67
      %s69 = sphi 0, %s67
      %s70 = sphi 0, %s69
      %s84 = sphi 0, %s70
      %s88 = sphi 0, %s88
      %s90 = sphi 0, %s88
      %s91 = sphi 0, %s90
      %s105 = sphi 0, %s91
      %s111 = sphi 0, %s113
      %s114 = sphi 0, %s111
      %s115 = sphi 0, %s114
      %s131 = sphi 0, %s115
      %s135 = sphi 0, %s135
      %s137 = sphi 0, %s135
      %s138 = sphi 0, %s137
      %s152 = sphi 0, %s138
      %s158 = sphi 0, %s160
      %s161 = sphi 0, %s158
      %s162 = sphi 0, %s161
      %s178 = sphi 0, %s162
    $region4: #{tpu_custom_call.1} parent=1 // loop_header_branch
      %22 = sbr.rel (%p20) target = $region8
    $region5: #{tpu_custom_call.1} parent=1 // loop_body
      %s24 = ssub.s32 %s19, 1
      %s25 = ssub.s32 %s19, 2
      %s32 = sadd.s32 1, %s27
      %p33 = scmp.ge.s32.totalorder %s32, 9
      %s34 = scalar_select %p33, 0, %s32
      %s35 = sadd.s32 1, %s26
      %s36 = scalar_select %p33, %s35, %s26
      %p37 = scmp.ge.s32.totalorder %s36, 1
      %s38 = scalar_select %p37, 0, %s36
      %s39 = ssub.s32 %s27, %s34
      %s40 = ssub.s32 %s26, %s38
      %s41 = sor.u32 %s39, %s40
      %p42 = scmp.eq.s32.totalorder %s41, 0
      %s44 = sadd.s32 %s43, 1
      %s45 = scalar_select %p42, %s43, %s44
      %p48 = pneg %p42
      %p49 = scmp.eq.s32.totalorder %s19, 8
      %p50 = por %p48, %p49
      %p51 = scmp.ne.s32.totalorder %s43, %s46
      %p52 = scmp.eq.s32.totalorder %s19, 0
      %p53 = por %p51, %p52
      %p54 = scmp.ne.s32.totalorder %s43, %s46
      %p55 = scmp.eq.s32.totalorder %s24, 8
      %p56 = por %p54, %p55
      %p57 = scmp.ne.s32.totalorder %s46, %s47
      %p58 = scmp.eq.s32.totalorder %s24, 0
      %p59 = por %p57, %p58
      %p60 = scmp.ne.s32.totalorder %s46, %s47
      %p61 = scmp.eq.s32.totalorder %s25, 8
      %p62 = por %p60, %p61
      %p64 = scmp.ne.s32.totalorder %s47, %s63
      %p65 = scmp.eq.s32.totalorder %s25, 0
      %p66 = por %p64, %p65
      %s68 = sadd.s32 %s67, 1
      %p71 = scmp.eq.s32.totalorder %s19, 8
      %p72 = scmp.ne.s32.totalorder %s67, %s69
      %p73 = scmp.eq.s32.totalorder %s19, 0
      %p74 = por %p72, %p73
      %p75 = scmp.ne.s32.totalorder %s67, %s69
      %p76 = scmp.eq.s32.totalorder %s24, 8
      %p77 = por %p75, %p76
      %p78 = scmp.ne.s32.totalorder %s69, %s70
      %p79 = scmp.eq.s32.totalorder %s24, 0
      %p80 = por %p78, %p79
      %p81 = scmp.ne.s32.totalorder %s69, %s70
      %p82 = scmp.eq.s32.totalorder %s25, 8
      %p83 = por %p81, %p82
      %p85 = scmp.ne.s32.totalorder %s70, %s84
      %p86 = scmp.eq.s32.totalorder %s25, 0
      %p87 = por %p85, %p86
      %s89 = sadd.s32 %s88, 1
      %p92 = scmp.eq.s32.totalorder %s19, 8
      %p93 = scmp.ne.s32.totalorder %s88, %s90
      %p94 = scmp.eq.s32.totalorder %s19, 0
      %p95 = por %p93, %p94
      %p96 = scmp.ne.s32.totalorder %s88, %s90
      %p97 = scmp.eq.s32.totalorder %s24, 8
      %p98 = por %p96, %p97
      %p99 = scmp.ne.s32.totalorder %s90, %s91
      %p100 = scmp.eq.s32.totalorder %s24, 0
      %p101 = por %p99, %p100
      %p102 = scmp.ne.s32.totalorder %s90, %s91
      %p103 = scmp.eq.s32.totalorder %s25, 8
      %p104 = por %p102, %p103
      %p106 = scmp.ne.s32.totalorder %s91, %s105
      %p107 = scmp.eq.s32.totalorder %s25, 0
      %p108 = por %p106, %p107
      %s109 = ssub.s32 %s27, %s34
      %p110 = scmp.eq.s32.totalorder %s109, 0
      %s112 = sadd.s32 %s111, 1
      %s113 = scalar_select %p110, %s111, %s112
      %p116 = pneg %p110
      %p117 = scmp.eq.s32.totalorder %s19, 8
      %p118 = por %p116, %p117
      %p119 = scmp.ne.s32.totalorder %s111, %s114
      %p120 = scmp.eq.s32.totalorder %s19, 0
      %p121 = por %p119, %p120
      %p122 = scmp.ne.s32.totalorder %s111, %s114
      %p123 = scmp.eq.s32.totalorder %s24, 8
      %p124 = por %p122, %p123
      %p125 = scmp.ne.s32.totalorder %s114, %s115
      %p126 = scmp.eq.s32.totalorder %s24, 0
      %p127 = por %p125, %p126
      %p128 = scmp.ne.s32.totalorder %s114, %s115
      %p129 = scmp.eq.s32.totalorder %s25, 8
      %p130 = por %p128, %p129
      %p132 = scmp.ne.s32.totalorder %s115, %s131
      %p133 = scmp.eq.s32.totalorder %s25, 0
      %p134 = por %p132, %p133
      %s136 = sadd.s32 %s135, 1
      %p139 = scmp.eq.s32.totalorder %s19, 8
      %p140 = scmp.ne.s32.totalorder %s135, %s137
      %p141 = scmp.eq.s32.totalorder %s19, 0
      %p142 = por %p140, %p141
      %p143 = scmp.ne.s32.totalorder %s135, %s137
      %p144 = scmp.eq.s32.totalorder %s24, 8
      %p145 = por %p143, %p144
      %p146 = scmp.ne.s32.totalorder %s137, %s138
      %p147 = scmp.eq.s32.totalorder %s24, 0
      %p148 = por %p146, %p147
      %p149 = scmp.ne.s32.totalorder %s137, %s138
      %p150 = scmp.eq.s32.totalorder %s25, 8
      %p151 = por %p149, %p150
      %p153 = scmp.ne.s32.totalorder %s138, %s152
      %p154 = scmp.eq.s32.totalorder %s25, 0
      %p155 = por %p153, %p154
      %s156 = ssub.s32 %s26, %s38
      %p157 = scmp.eq.s32.totalorder %s156, 0
      %s159 = sadd.s32 %s158, 1
      %s160 = scalar_select %p157, %s158, %s159
      %p163 = pneg %p157
      %p164 = scmp.eq.s32.totalorder %s19, 8
      %p165 = por %p163, %p164
      %p166 = scmp.ne.s32.totalorder %s158, %s161
      %p167 = scmp.eq.s32.totalorder %s19, 0
      %p168 = por %p166, %p167
      %p169 = scmp.ne.s32.totalorder %s158, %s161
      %p170 = scmp.eq.s32.totalorder %s24, 8
      %p171 = por %p169, %p170
      %p172 = scmp.ne.s32.totalorder %s161, %s162
      %p173 = scmp.eq.s32.totalorder %s24, 0
      %p174 = por %p172, %p173
      %p175 = scmp.ne.s32.totalorder %s161, %s162
      %p176 = scmp.eq.s32.totalorder %s25, 8
      %p177 = por %p175, %p176
      %p179 = scmp.ne.s32.totalorder %s162, %s178
      %p180 = scmp.eq.s32.totalorder %s25, 0
      %p181 = por %p179, %p180
      %p182 = scmp.le.s32.totalorder 1, %s19
      %p183 = scmp.lt.s32.totalorder %s19, 10
      %p184 = pnand %p182, %p183
      %p185 = pneg %p184
      // Predicated region
      $region9: #{tpu_custom_call.1} parent=5 // pred_check
        _
      $region10: #{tpu_custom_call.1} parent=5 // pred_check_branch
        %187 = sbr.rel (%p184) target = $region12
      $region11: #{tpu_custom_call.1} parent=5 // pred_region
        %s188 = ssub.s32 %s19, 1
        // Predicated region
        $region13: #{tpu_custom_call.1} parent=11 // pred_check
          %p189 = pneg %p80
        $region14: #{tpu_custom_call.1} parent=11 // pred_check_branch
          %191 = sbr.rel (%p189) target = $region16
        $region15: #{tpu_custom_call.1} parent=11 // pred_region
          %s193 = ssub.s32 2304, 2304
          %194 = vsyncadd [#allocation6], %s193
          %s195 = sshll.u32 [#allocation5], 4
          %s196 = int_to_ptr.vmem [resolvable:$true] %s195
          %201 = dma.hbm_to_vmem [thread:$0]  %s1, 2304, %s196, [#allocation6], 256, 256, 16
        $region16: #{tpu_custom_call.1} parent=11 // pred_fallthru
          _
        // Predicated region
        $region17: #{tpu_custom_call.1} parent=11 // pred_check
          %p202 = pneg %p101
        $region18: #{tpu_custom_call.1} parent=11 // pred_check_branch
          %204 = sbr.rel (%p202) target = $region20
        $region19: #{tpu_custom_call.1} parent=11 // pred_region
          %s206 = ssub.s32 64, 64
          %207 = vsyncadd [#allocation6], %s206
          %s209 = sshll.u32 [#allocation7], 4
          %s210 = int_to_ptr.vmem [resolvable:$true] %s209
          %212 = dma.hbm_to_vmem [thread:$0]  %s2, 64, %s210, [#allocation6]
        $region20: #{tpu_custom_call.1} parent=11 // pred_fallthru
          _
        // Predicated region
        $region21: #{tpu_custom_call.1} parent=11 // pred_check
          %p213 = pneg %p148
        $region22: #{tpu_custom_call.1} parent=11 // pred_check_branch
          %215 = sbr.rel (%p213) target = $region24
        $region23: #{tpu_custom_call.1} parent=11 // pred_region
          %s217 = ssub.s32 32, 32
          %218 = vsyncadd [#allocation9], %s217
          %s220 = sshll.u32 [#allocation10], 4
          %s221 = int_to_ptr.vmem [resolvable:$true] %s220
          %223 = dma.hbm_to_vmem [thread:$0]  %s4, 32, %s221, [#allocation9]
        $region24: #{tpu_custom_call.1} parent=11 // pred_fallthru
          _
      $region12: #{tpu_custom_call.1} parent=5 // pred_fallthru
        _
      %p224 = scmp.lt.s32.totalorder %s19, 9
      // Predicated region
      $region25: #{tpu_custom_call.1} parent=5 // pred_check
        %p225 = pneg %p224
      $region26: #{tpu_custom_call.1} parent=5 // pred_check_branch
        %227 = sbr.rel (%p225) target = $region28
      $region27: #{tpu_custom_call.1} parent=5 // pred_region
        // Predicated region
        $region29: #{tpu_custom_call.1} parent=27 // pred_check
          %p228 = pneg %p53
        $region30: #{tpu_custom_call.1} parent=27 // pred_check_branch
          %230 = sbr.rel (%p228) target = $region32
        $region31: #{tpu_custom_call.1} parent=27 // pred_region
          %s231 = sand.u32 %s43, 1
          %s232 = scalar_lea.sflag [#allocation3], %s231
          %s233 = sand.u32 %s43, 1
          %s234 = smul.addr %s233, 16
          %s235 = scalar_lea.vmem [#allocation2], %s234
          %s236 = smul.u32 4, %s27
          %s238 = ssub.s32 256, 256
          %239 = vsyncadd %s232, %s238
          %s240 = sadd.s32 %s26, %s236
          %s241 = smul.addr %s240, 64
          %s242 = scalar_lea.hbm %s0, %s241
          %s243 = sshll.u32 %s235, 4
          %s244 = int_to_ptr.vmem [resolvable:$true] %s243
          %249 = dma.hbm_to_vmem [thread:$0]  %s242, 256, %s244, %s232, 64, 64, 4
        $region32: #{tpu_custom_call.1} parent=27 // pred_fallthru
          _
        // Predicated region
        $region33: #{tpu_custom_call.1} parent=27 // pred_check
          %p250 = pneg %p121
        $region34: #{tpu_custom_call.1} parent=27 // pred_check_branch
          %252 = sbr.rel (%p250) target = $region36
        $region35: #{tpu_custom_call.1} parent=27 // pred_region
          %s253 = sand.u32 %s19, 1
          %s254 = scalar_lea.sflag [#allocation9], %s253
          %s255 = sand.u32 %s111, 1
          %s256 = smul.addr %s255, 2048
          %s257 = scalar_lea.vmem [#allocation8], %s256
          %s258 = smul.u32 256, %s27
          %s260 = ssub.s32 32768, 32768
          %261 = vsyncadd %s254, %s260
          %s262 = smul.addr %s258, 2
          %s263 = smul.addr %s262, 64
          %s264 = scalar_lea.hbm %s3, %s263
          %s265 = sshll.u32 %s257, 4
          %s266 = int_to_ptr.vmem [resolvable:$true] %s265
          %271 = dma.hbm_to_vmem [thread:$0]  %s264, 32768, %s266, %s254, 128, 128, 8
        $region36: #{tpu_custom_call.1} parent=27 // pred_fallthru
          _
      $region28: #{tpu_custom_call.1} parent=5 // pred_fallthru
        _
      %p272 = scmp.le.s32.totalorder 1, %s19
      %p273 = scmp.lt.s32.totalorder %s19, 10
      %p274 = pnand %p272, %p273
      %p275 = pneg %p274
      // Predicated region
      $region37: #{tpu_custom_call.1} parent=5 // pred_check
        _
      $region38: #{tpu_custom_call.1} parent=5 // pred_check_branch
        %277 = sbr.rel (%p274) target = $region40
      $region39: #{tpu_custom_call.1} parent=5 // pred_region
        %s278 = ssub.s32 %s19, 1
        %s279 = sand.u32 %s46, 1
        %s280 = scalar_lea.sflag [#allocation3], %s279
        %s281 = sand.u32 %s46, 1
        %s282 = smul.addr %s281, 16
        %s283 = scalar_lea.vmem [#allocation2], %s282
        // Predicated region
        $region41: #{tpu_custom_call.1} parent=39 // pred_check
          %p284 = pneg %p59
        $region42: #{tpu_custom_call.1} parent=39 // pred_check_branch
          %286 = sbr.rel (%p284) target = $region44
        $region43: #{tpu_custom_call.1} parent=39 // pred_region
          %287 = dma.done %s280, 256
        $region44: #{tpu_custom_call.1} parent=39 // pred_fallthru
          _
        // Predicated region
        $region45: #{tpu_custom_call.1} parent=39 // pred_check
          %p288 = pneg %p80
        $region46: #{tpu_custom_call.1} parent=39 // pred_check_branch
          %290 = sbr.rel (%p288) target = $region48
        $region47: #{tpu_custom_call.1} parent=39 // pred_region
          %291 = dma.done [#allocation6], 2304
        $region48: #{tpu_custom_call.1} parent=39 // pred_fallthru
          _
        // Predicated region
        $region49: #{tpu_custom_call.1} parent=39 // pred_check
          %p292 = pneg %p101
        $region50: #{tpu_custom_call.1} parent=39 // pred_check_branch
          %294 = sbr.rel (%p292) target = $region52
        $region51: #{tpu_custom_call.1} parent=39 // pred_region
          %295 = dma.done [#allocation6], 64
        $region52: #{tpu_custom_call.1} parent=39 // pred_fallthru
          _
        %s296 = sand.u32 %s24, 1
        %s297 = scalar_lea.sflag [#allocation9], %s296
        %s298 = sand.u32 %s114, 1
        %s299 = smul.addr %s298, 2048
        %s300 = scalar_lea.vmem [#allocation8], %s299
        // Predicated region
        $region53: #{tpu_custom_call.1} parent=39 // pred_check
          %p301 = pneg %p127
        $region54: #{tpu_custom_call.1} parent=39 // pred_check_branch
          %303 = sbr.rel (%p301) target = $region56
        $region55: #{tpu_custom_call.1} parent=39 // pred_region
          %304 = dma.done %s297, 32768
        $region56: #{tpu_custom_call.1} parent=39 // pred_fallthru
          _
        // Predicated region
        $region57: #{tpu_custom_call.1} parent=39 // pred_check
          %p305 = pneg %p148
        $region58: #{tpu_custom_call.1} parent=39 // pred_check_branch
          %307 = sbr.rel (%p305) target = $region60
        $region59: #{tpu_custom_call.1} parent=39 // pred_region
          %308 = dma.done [#allocation9], 32
        $region60: #{tpu_custom_call.1} parent=39 // pred_fallthru
          _
        %s309 = sand.u32 %s46, 1
        %s310 = scalar_lea.sflag [#allocation3], %s309
        %s311 = sand.u32 %s46, 1
        %s312 = smul.addr %s311, 16
        %s313 = scalar_lea.vmem [#allocation2], %s312
        %p314 = pneg %p59
        %p315 = pneg %p56
        %p316 = pneg %p80
        %p317 = pneg %p77
        %p318 = pneg %p101
        %p319 = pneg %p98
        %s320 = sand.u32 %s24, 1
        %s321 = scalar_lea.sflag [#allocation9], %s320
        %s322 = sand.u32 %s114, 1
        %s323 = smul.addr %s322, 2048
        %s324 = scalar_lea.vmem [#allocation8], %s323
        %p325 = pneg %p127
        %p326 = pneg %p124
        %p327 = pneg %p148
        %p328 = pneg %p145
        %p329 = pneg %p174
        %p330 = pneg %p171
        %s331 = smul.u32 4, %s29
        %s332 = smul.u32 256, %s29
        %p334 = scmp.eq.s32.totalorder %s29, 0
        // Predicated region
        $region61: #{tpu_custom_call.1} parent=39 // pred_check
          %p335 = pneg %p334
        $region62: #{tpu_custom_call.1} parent=39 // pred_check_branch
          %337 = sbr.rel (%p335) target = $region64
        $region63: #{tpu_custom_call.1} parent=39 // pred_region
          %338 = vst [vmem:[#allocation11] sm:$0xff] 0.0
          %339 = vst [vmem:[#allocation11 + $0x8] sm:$0xff] 0.0
        $region64: #{tpu_custom_call.1} parent=39 // pred_fallthru
          _
        %v340 = vld [vmem:[%s283] sm:$0xf]
        %v341 = vld [vmem:[#allocation5] sm:$0xff]
        %v342 = vld [vmem:[#allocation5 + $0x8] sm:$0xff]
        %v343 = vld [vmem:[#allocation5 + $0x10] sm:$0xff]
        %v344 = vld [vmem:[#allocation5 + $0x18] sm:$0xff]
        %v345 = vld [vmem:[#allocation5 + $0x20] sm:$0xff]
        %v346 = vld [vmem:[#allocation5 + $0x28] sm:$0xff]
        %v347 = vld [vmem:[#allocation5 + $0x30] sm:$0xff]
        %v348 = vld [vmem:[#allocation5 + $0x38] sm:$0xff]
        %v349 = vld [vmem:[#allocation5 + $0x40] sm:$0xff]
        %v350 = vld [vmem:[#allocation5 + $0x48] sm:$0xff]
        %v351 = vld [vmem:[#allocation5 + $0x50] sm:$0xff]
        %v352 = vld [vmem:[#allocation5 + $0x58] sm:$0xff]
        %v353 = vld [vmem:[#allocation5 + $0x60] sm:$0xff]
        %v354 = vld [vmem:[#allocation5 + $0x68] sm:$0xff]
        %v355 = vld [vmem:[#allocation5 + $0x70] sm:$0xff]
        %v356 = vld [vmem:[#allocation5 + $0x78] sm:$0xff]
        %v357 = vld [vmem:[#allocation5 + $0x80] sm:$0x77]
        %v358 = vld [vmem:[#allocation5 + $0x88] sm:$0x77]
        %v359 = vld [vmem:[#allocation7] sm:$0xf]
        %v361 = vlaneseq
        %v362 = vshrl.u32 %v361, 7
        %v363 = vsub.s32 0, %v362
        %v364 = vrot.slane %v359, %v363
        %v365 = vlaneseq
        %v366 = vshrl.u32 %v365, 7
        %v367 = vsub.s32 1, %v366
        %v368 = vrot.slane %v359, %v367
        %v369 = vlaneseq
        %v370 = vshrl.u32 %v369, 7
        %v371 = vsub.s32 2, %v370
        %v372 = vrot.slane %v359, %v371
        %v373 = vlaneseq
        %v374 = vshrl.u32 %v373, 7
        %v375 = vsub.s32 3, %v374
        %v376 = vrot.slane %v359, %v375
        %v399 = vunpack.c.l.b16 %v341
        %v400 = vunpack.c.h.b16 %v341
        %v401 = vunpack.c.l.b16 %v342
        %v402 = vunpack.c.h.b16 %v342
        %v403 = vunpack.c.l.b16 %v343
        %v404 = vunpack.c.h.b16 %v343
        %v405 = vunpack.c.l.b16 %v344
        %v406 = vunpack.c.h.b16 %v344
        %v407 = vunpack.c.l.b16 %v345
        %v408 = vunpack.c.h.b16 %v345
        %v409 = vunpack.c.l.b16 %v346
        %v410 = vunpack.c.h.b16 %v346
        %v411 = vunpack.c.l.b16 %v347
        %v412 = vunpack.c.h.b16 %v347
        %v413 = vunpack.c.l.b16 %v348
        %v414 = vunpack.c.h.b16 %v348
        %v415 = vunpack.c.l.b16 %v349
        %v416 = vunpack.c.h.b16 %v349
        %v417 = vunpack.c.l.b16 %v350
        %v418 = vunpack.c.h.b16 %v350
        %v419 = vunpack.c.l.b16 %v351
        %v420 = vunpack.c.h.b16 %v351
        %v421 = vunpack.c.l.b16 %v352
        %v422 = vunpack.c.h.b16 %v352
        %v423 = vunpack.c.l.b16 %v353
        %v424 = vunpack.c.h.b16 %v353
        %v425 = vunpack.c.l.b16 %v354
        %v426 = vunpack.c.h.b16 %v354
        %v427 = vunpack.c.l.b16 %v355
        %v428 = vunpack.c.h.b16 %v355
        %v429 = vunpack.c.l.b16 %v356
        %v430 = vunpack.c.h.b16 %v356
        %v431 = vunpack.c.l.b16 %v357
        %v432 = vunpack.c.h.b16 %v357
        %v433 = vunpack.c.l.b16 %v358
        %v434 = vunpack.c.h.b16 %v358
        %v435 = vpack.c.b16 %v403, %v399
        %v436 = vpack.c.b16 %v404, %v400
        %v437 = vpack.c.b16 %v405, %v401
        %v438 = vpack.c.b16 %v406, %v402
        %v439 = vpack.c.b16 %v411, %v407
        %v440 = vpack.c.b16 %v412, %v408
        %v441 = vpack.c.b16 %v413, %v409
        %v442 = vpack.c.b16 %v414, %v410
        %v443 = vpack.c.b16 %v419, %v415
        %v444 = vpack.c.b16 %v420, %v416
        %v445 = vpack.c.b16 %v421, %v417
        %v446 = vpack.c.b16 %v422, %v418
        %v447 = vpack.c.b16 %v427, %v423
        %v448 = vpack.c.b16 %v428, %v424
        %v449 = vpack.c.b16 %v429, %v425
        %v450 = vpack.c.b16 %v430, %v426
        %v451 = vpack.c.b16 %v431, %v431
        %v452 = vpack.c.b16 %v432, %v432
        %v453 = vpack.c.b16 %v433, %v433
        %v454 = vpack.c.b16 %v434, %v434
        %vm471 = vcmask 572416
        %v473 = vsel %vm471, %v340, 0
        %vm475 = vcmask 1042432
        %v477 = vsel %vm475, %v451, 0
        %v480 = vsel %vm475, %v452, 0
        %v483 = vsel %vm475, %v453, 0
        %v486 = vsel %vm475, %v454, 0
        %488 = vmatprep.subr.bf16.mxu0 %v436
        %489 = vmatpush1.bf16.msra.mxu0 %v435
        %490 = vmatprep.subr.bf16.mxu0 %v440
        %491 = vmatpush1.bf16.msra.mxu0 %v439
        %492 = vmatprep.subr.bf16.mxu0 %v444
        %493 = vmatpush1.bf16.msra.mxu0 %v443
        %494 = vmatprep.subr.bf16.mxu0 %v448
        %495 = vmatpush1.bf16.msra.mxu0 %v447
        %496 = vmatprep.subr.bf16.mxu0 %v480
        %497 = vmatpush1.bf16.msra.mxu0 %v477
        %498 = vmatprep.subr.bf16.mxu0 0
        %499 = vmatpush1.bf16.msra.mxu0 0
        %500 = vmatprep.subr.bf16.mxu0 0
        %501 = vmatpush1.bf16.msra.mxu0 0
        %502 = vmatprep.subr.bf16.mxu0 0
        %503 = vmatpush1.bf16.msra.mxu0 0
        %504 = vmatprep.subr.bf16.mxu0 0
        %505 = vmatpush1.bf16.msra.mxu0 0
        %506 = vmatprep.subr.bf16.mxu0 0
        %507 = vmatpush1.bf16.msra.mxu0 0
        %508 = vmatprep.subr.bf16.mxu0 0
        %509 = vmatpush1.bf16.msra.mxu0 0
        %510 = vmatprep.subr.bf16.mxu0 0
        %511 = vmatpush1.bf16.msra.mxu0 0
        %512 = vmatprep.subr.bf16.mxu0 0
        %513 = vmatpush1.bf16.msra.mxu0 0
        %514 = vmatprep.subr.bf16.mxu0 0
        %515 = vmatpush1.bf16.msra.mxu0 0
        %516 = vmatprep.subr.bf16.mxu0 0
        %517 = vmatpush1.bf16.msra.mxu0 0
        %518 = vmatprep.subr.bf16.mxu0 0
        %519 = vmatpush1.bf16.msra.mxu0 0
        %520 = vmatprep.mubr.bf16.mxu0 0
        %521 = vmatmul.mubr.bf16.gmra.mrb[0].mxu0 %v473
        %v522 = vpop.f32.mrb[0].mxu0
        %v523 = vadd.f32 %v364, %v522
        %v524 = vpop.f32.mrb[0].mxu0
        %v525 = vadd.f32 %v368, %v524
        %v526 = vpop.f32.mrb[0].mxu0
        %v527 = vpop.f32.mrb[0].mxu0
        %528 = vdwg.mxu0
        %529 = vmatprep.subr.bf16.mxu0 %v438
        %530 = vmatpush1.bf16.msra.mxu0 %v437
        %531 = vmatprep.subr.bf16.mxu0 %v442
        %532 = vmatpush1.bf16.msra.mxu0 %v441
        %533 = vmatprep.subr.bf16.mxu0 %v446
        %534 = vmatpush1.bf16.msra.mxu0 %v445
        %535 = vmatprep.subr.bf16.mxu0 %v450
        %536 = vmatpush1.bf16.msra.mxu0 %v449
        %537 = vmatprep.subr.bf16.mxu0 %v486
        %538 = vmatpush1.bf16.msra.mxu0 %v483
        %539 = vmatprep.subr.bf16.mxu0 0
        %540 = vmatpush1.bf16.msra.mxu0 0
        %541 = vmatprep.subr.bf16.mxu0 0
        %542 = vmatpush1.bf16.msra.mxu0 0
        %543 = vmatprep.subr.bf16.mxu0 0
        %544 = vmatpush1.bf16.msra.mxu0 0
        %545 = vmatprep.subr.bf16.mxu0 0
        %546 = vmatpush1.bf16.msra.mxu0 0
        %547 = vmatprep.subr.bf16.mxu0 0
        %548 = vmatpush1.bf16.msra.mxu0 0
        %549 = vmatprep.subr.bf16.mxu0 0
        %550 = vmatpush1.bf16.msra.mxu0 0
        %551 = vmatprep.subr.bf16.mxu0 0
        %552 = vmatpush1.bf16.msra.mxu0 0
        %553 = vmatprep.subr.bf16.mxu0 0
        %554 = vmatpush1.bf16.msra.mxu0 0
        %555 = vmatprep.subr.bf16.mxu0 0
        %556 = vmatpush1.bf16.msra.mxu0 0
        %557 = vmatprep.subr.bf16.mxu0 0
        %558 = vmatpush1.bf16.msra.mxu0 0
        %559 = vmatprep.subr.bf16.mxu0 0
        %560 = vmatpush1.bf16.msra.mxu0 0
        %561 = vmatprep.mubr.bf16.mxu0 0
        %562 = vmatmul.mubr.bf16.gmra.mrb[0].mxu0 %v473
        %v563 = vpop.f32.mrb[0].mxu0
        %v564 = vadd.f32 %v372, %v563
        %v565 = vpop.f32.mrb[0].mxu0
        %v566 = vadd.f32 %v376, %v565
        %v567 = vpop.f32.mrb[0].mxu0
        %v568 = vpop.f32.mrb[0].mxu0
        %569 = vdwg.mxu0
        %v570 = vmax.f32 %v523, 0.0
        %v571 = vmax.f32 %v525, 0.0
        %v572 = vmax.f32 %v564, 0.0
        %v573 = vmax.f32 %v566, 0.0
        %v574 = vpack.c.bf16 %v570, %v570
        %v575 = vpack.c.bf16 %v571, %v571
        %v576 = vpack.c.bf16 %v572, %v572
        %v577 = vpack.c.bf16 %v573, %v573
        %v578 = vld [vmem:[%s300] sm:$0xff]
        %v579 = vld [vmem:[%s300 + $0x8] sm:$0xff]
        %v580 = vld [vmem:[%s300 + $0x10] sm:$0xff]
        %v581 = vld [vmem:[%s300 + $0x18] sm:$0xff]
        %v582 = vld [vmem:[%s300 + $0x20] sm:$0xff]
        %v583 = vld [vmem:[%s300 + $0x28] sm:$0xff]
        %v584 = vld [vmem:[%s300 + $0x30] sm:$0xff]
        %v585 = vld [vmem:[%s300 + $0x38] sm:$0xff]
        %v586 = vld [vmem:[%s300 + $0x40] sm:$0xff]
        %v587 = vld [vmem:[%s300 + $0x48] sm:$0xff]
        %v588 = vld [vmem:[%s300 + $0x50] sm:$0xff]
        %v589 = vld [vmem:[%s300 + $0x58] sm:$0xff]
        %v590 = vld [vmem:[%s300 + $0x60] sm:$0xff]
        %v591 = vld [vmem:[%s300 + $0x68] sm:$0xff]
        %v592 = vld [vmem:[%s300 + $0x70] sm:$0xff]
        %v593 = vld [vmem:[%s300 + $0x78] sm:$0xff]
        %v594 = vld [vmem:[%s300 + $0x80] sm:$0xff]
        %v595 = vld [vmem:[%s300 + $0x88] sm:$0xff]
        %v596 = vld [vmem:[%s300 + $0x90] sm:$0xff]
        %v597 = vld [vmem:[%s300 + $0x98] sm:$0xff]
        %v598 = vld [vmem:[%s300 + $0xa0] sm:$0xff]
        %v599 = vld [vmem:[%s300 + $0xa8] sm:$0xff]
        %v600 = vld [vmem:[%s300 + $0xb0] sm:$0xff]
        %v601 = vld [vmem:[%s300 + $0xb8] sm:$0xff]
        %v602 = vld [vmem:[%s300 + $0xc0] sm:$0xff]
        %v603 = vld [vmem:[%s300 + $0xc8] sm:$0xff]
        %v604 = vld [vmem:[%s300 + $0xd0] sm:$0xff]
        %v605 = vld [vmem:[%s300 + $0xd8] sm:$0xff]
        %v606 = vld [vmem:[%s300 + $0xe0] sm:$0xff]
        %v607 = vld [vmem:[%s300 + $0xe8] sm:$0xff]
        %v608 = vld [vmem:[%s300 + $0xf0] sm:$0xff]
        %v609 = vld [vmem:[%s300 + $0xf8] sm:$0xff]
        %v610 = vld [vmem:[%s300 + $0x100] sm:$0xff]
        %v611 = vld [vmem:[%s300 + $0x108] sm:$0xff]
        %v612 = vld [vmem:[%s300 + $0x110] sm:$0xff]
        %v613 = vld [vmem:[%s300 + $0x118] sm:$0xff]
        %v614 = vld [vmem:[%s300 + $0x120] sm:$0xff]
        %v615 = vld [vmem:[%s300 + $0x128] sm:$0xff]
        %v616 = vld [vmem:[%s300 + $0x130] sm:$0xff]
        %v617 = vld [vmem:[%s300 + $0x138] sm:$0xff]
        %v618 = vld [vmem:[%s300 + $0x140] sm:$0xff]
        %v619 = vld [vmem:[%s300 + $0x148] sm:$0xff]
        %v620 = vld [vmem:[%s300 + $0x150] sm:$0xff]
        %v621 = vld [vmem:[%s300 + $0x158] sm:$0xff]
        %v622 = vld [vmem:[%s300 + $0x160] sm:$0xff]
        %v623 = vld [vmem:[%s300 + $0x168] sm:$0xff]
        %v624 = vld [vmem:[%s300 + $0x170] sm:$0xff]
        %v625 = vld [vmem:[%s300 + $0x178] sm:$0xff]
        %v626 = vld [vmem:[%s300 + $0x180] sm:$0xff]
        %v627 = vld [vmem:[%s300 + $0x188] sm:$0xff]
        %v628 = vld [vmem:[%s300 + $0x190] sm:$0xff]
        %v629 = vld [vmem:[%s300 + $0x198] sm:$0xff]
        %v630 = vld [vmem:[%s300 + $0x1a0] sm:$0xff]
        %v631 = vld [vmem:[%s300 + $0x1a8] sm:$0xff]
        %v632 = vld [vmem:[%s300 + $0x1b0] sm:$0xff]
        %v633 = vld [vmem:[%s300 + $0x1b8] sm:$0xff]
        %v634 = vld [vmem:[%s300 + $0x1c0] sm:$0xff]
        %v635 = vld [vmem:[%s300 + $0x1c8] sm:$0xff]
        %v636 = vld [vmem:[%s300 + $0x1d0] sm:$0xff]
        %v637 = vld [vmem:[%s300 + $0x1d8] sm:$0xff]
        %v638 = vld [vmem:[%s300 + $0x1e0] sm:$0xff]
        %v639 = vld [vmem:[%s300 + $0x1e8] sm:$0xff]
        %v640 = vld [vmem:[%s300 + $0x1f0] sm:$0xff]
        %v641 = vld [vmem:[%s300 + $0x1f8] sm:$0xff]
        %s642 = scalar_lea.vmem %s283, 4 [#allocation2]
        %v643 = vld [vmem:[%s642] sm:$0xf]
        %v645 = vsel %vm471, %v643, 0
        %647 = vmatprep.subr.bf16.mxu0 %v436
        %648 = vmatpush1.bf16.msra.mxu0 %v435
        %649 = vmatprep.subr.bf16.mxu0 %v440
        %650 = vmatpush1.bf16.msra.mxu0 %v439
        %651 = vmatprep.subr.bf16.mxu0 %v444
        %652 = vmatpush1.bf16.msra.mxu0 %v443
        %653 = vmatprep.subr.bf16.mxu0 %v448
        %654 = vmatpush1.bf16.msra.mxu0 %v447
        %655 = vmatprep.subr.bf16.mxu0 %v480
        %656 = vmatpush1.bf16.msra.mxu0 %v477
        %657 = vmatprep.subr.bf16.mxu0 0
        %658 = vmatpush1.bf16.msra.mxu0 0
        %659 = vmatprep.subr.bf16.mxu0 0
        %660 = vmatpush1.bf16.msra.mxu0 0
        %661 = vmatprep.subr.bf16.mxu0 0
        %662 = vmatpush1.bf16.msra.mxu0 0
        %663 = vmatprep.subr.bf16.mxu0 0
        %664 = vmatpush1.bf16.msra.mxu0 0
        %665 = vmatprep.subr.bf16.mxu0 0
        %666 = vmatpush1.bf16.msra.mxu0 0
        %667 = vmatprep.subr.bf16.mxu0 0
        %668 = vmatpush1.bf16.msra.mxu0 0
        %669 = vmatprep.subr.bf16.mxu0 0
        %670 = vmatpush1.bf16.msra.mxu0 0
        %671 = vmatprep.subr.bf16.mxu0 0
        %672 = vmatpush1.bf16.msra.mxu0 0
        %673 = vmatprep.subr.bf16.mxu0 0
        %674 = vmatpush1.bf16.msra.mxu0 0
        %675 = vmatprep.subr.bf16.mxu0 0
        %676 = vmatpush1.bf16.msra.mxu0 0
        %677 = vmatprep.subr.bf16.mxu0 0
        %678 = vmatpush1.bf16.msra.mxu0 0
        %679 = vmatprep.mubr.bf16.mxu0 0
        %680 = vmatmul.mubr.bf16.gmra.mrb[0].mxu0 %v645
        %v681 = vpop.f32.mrb[0].mxu0
        %v682 = vadd.f32 %v364, %v681
        %v683 = vpop.f32.mrb[0].mxu0
        %v684 = vadd.f32 %v368, %v683
        %v685 = vpop.f32.mrb[0].mxu0
        %v686 = vpop.f32.mrb[0].mxu0
        %687 = vdwg.mxu0
        %688 = vmatprep.subr.bf16.mxu0 %v438
        %689 = vmatpush1.bf16.msra.mxu0 %v437
        %690 = vmatprep.subr.bf16.mxu0 %v442
        %691 = vmatpush1.bf16.msra.mxu0 %v441
        %692 = vmatprep.subr.bf16.mxu0 %v446
        %693 = vmatpush1.bf16.msra.mxu0 %v445
        %694 = vmatprep.subr.bf16.mxu0 %v450
        %695 = vmatpush1.bf16.msra.mxu0 %v449
        %696 = vmatprep.subr.bf16.mxu0 %v486
        %697 = vmatpush1.bf16.msra.mxu0 %v483
        %698 = vmatprep.subr.bf16.mxu0 0
        %699 = vmatpush1.bf16.msra.mxu0 0
        %700 = vmatprep.subr.bf16.mxu0 0
        %701 = vmatpush1.bf16.msra.mxu0 0
        %702 = vmatprep.subr.bf16.mxu0 0
        %703 = vmatpush1.bf16.msra.mxu0 0
        %704 = vmatprep.subr.bf16.mxu0 0
        %705 = vmatpush1.bf16.msra.mxu0 0
        %706 = vmatprep.subr.bf16.mxu0 0
        %707 = vmatpush1.bf16.msra.mxu0 0
        %708 = vmatprep.subr.bf16.mxu0 0
        %709 = vmatpush1.bf16.msra.mxu0 0
        %710 = vmatprep.subr.bf16.mxu0 0
        %711 = vmatpush1.bf16.msra.mxu0 0
        %712 = vmatprep.subr.bf16.mxu0 0
        %713 = vmatpush1.bf16.msra.mxu0 0
        %714 = vmatprep.subr.bf16.mxu0 0
        %715 = vmatpush1.bf16.msra.mxu0 0
        %716 = vmatprep.subr.bf16.mxu0 0
        %717 = vmatpush1.bf16.msra.mxu0 0
        %718 = vmatprep.subr.bf16.mxu0 0
        %719 = vmatpush1.bf16.msra.mxu0 0
        %720 = vmatprep.mubr.bf16.mxu0 0
        %721 = vmatmul.mubr.bf16.gmra.mrb[0].mxu0 %v645
        %v722 = vpop.f32.mrb[0].mxu0
        %v723 = vadd.f32 %v372, %v722
        %v724 = vpop.f32.mrb[0].mxu0
        %v725 = vadd.f32 %v376, %v724
        %v726 = vpop.f32.mrb[0].mxu0
        %v727 = vpop.f32.mrb[0].mxu0
        %728 = vdwg.mxu0
        %v729 = vmax.f32 %v682, 0.0
        %v730 = vmax.f32 %v684, 0.0
        %v731 = vmax.f32 %v723, 0.0
        %v732 = vmax.f32 %v725, 0.0
        %v733 = vpack.c.bf16 %v729, %v729
        %v734 = vpack.c.bf16 %v730, %v730
        %v735 = vpack.c.bf16 %v731, %v731
        %v736 = vpack.c.bf16 %v732, %v732
        %v737 = vld [vmem:[%s300 + $0x200] sm:$0xff]
        %v738 = vld [vmem:[%s300 + $0x208] sm:$0xff]
        %v739 = vld [vmem:[%s300 + $0x210] sm:$0xff]
        %v740 = vld [vmem:[%s300 + $0x218] sm:$0xff]
        %v741 = vld [vmem:[%s300 + $0x220] sm:$0xff]
        %v742 = vld [vmem:[%s300 + $0x228] sm:$0xff]
        %v743 = vld [vmem:[%s300 + $0x230] sm:$0xff]
        %v744 = vld [vmem:[%s300 + $0x238] sm:$0xff]
        %v745 = vld [vmem:[%s300 + $0x240] sm:$0xff]
        %v746 = vld [vmem:[%s300 + $0x248] sm:$0xff]
        %v747 = vld [vmem:[%s300 + $0x250] sm:$0xff]
        %v748 = vld [vmem:[%s300 + $0x258] sm:$0xff]
        %v749 = vld [vmem:[%s300 + $0x260] sm:$0xff]
        %v750 = vld [vmem:[%s300 + $0x268] sm:$0xff]
        %v751 = vld [vmem:[%s300 + $0x270] sm:$0xff]
        %v752 = vld [vmem:[%s300 + $0x278] sm:$0xff]
        %v753 = vld [vmem:[%s300 + $0x280] sm:$0xff]
        %v754 = vld [vmem:[%s300 + $0x288] sm:$0xff]
        %v755 = vld [vmem:[%s300 + $0x290] sm:$0xff]
        %v756 = vld [vmem:[%s300 + $0x298] sm:$0xff]
        %v757 = vld [vmem:[%s300 + $0x2a0] sm:$0xff]
        %v758 = vld [vmem:[%s300 + $0x2a8] sm:$0xff]
        %v759 = vld [vmem:[%s300 + $0x2b0] sm:$0xff]
        %v760 = vld [vmem:[%s300 + $0x2b8] sm:$0xff]
        %v761 = vld [vmem:[%s300 + $0x2c0] sm:$0xff]
        %v762 = vld [vmem:[%s300 + $0x2c8] sm:$0xff]
        %v763 = vld [vmem:[%s300 + $0x2d0] sm:$0xff]
        %v764 = vld [vmem:[%s300 + $0x2d8] sm:$0xff]
        %v765 = vld [vmem:[%s300 + $0x2e0] sm:$0xff]
        %v766 = vld [vmem:[%s300 + $0x2e8] sm:$0xff]
        %v767 = vld [vmem:[%s300 + $0x2f0] sm:$0xff]
        %v768 = vld [vmem:[%s300 + $0x2f8] sm:$0xff]
        %v769 = vld [vmem:[%s300 + $0x300] sm:$0xff]
        %v770 = vld [vmem:[%s300 + $0x308] sm:$0xff]
        %v771 = vld [vmem:[%s300 + $0x310] sm:$0xff]
        %v772 = vld [vmem:[%s300 + $0x318] sm:$0xff]
        %v773 = vld [vmem:[%s300 + $0x320] sm:$0xff]
        %v774 = vld [vmem:[%s300 + $0x328] sm:$0xff]
        %v775 = vld [vmem:[%s300 + $0x330] sm:$0xff]
        %v776 = vld [vmem:[%s300 + $0x338] sm:$0xff]
        %v777 = vld [vmem:[%s300 + $0x340] sm:$0xff]
        %v778 = vld [vmem:[%s300 + $0x348] sm:$0xff]
        %v779 = vld [vmem:[%s300 + $0x350] sm:$0xff]
        %v780 = vld [vmem:[%s300 + $0x358] sm:$0xff]
        %v781 = vld [vmem:[%s300 + $0x360] sm:$0xff]
        %v782 = vld [vmem:[%s300 + $0x368] sm:$0xff]
        %v783 = vld [vmem:[%s300 + $0x370] sm:$0xff]
        %v784 = vld [vmem:[%s300 + $0x378] sm:$0xff]
        %v785 = vld [vmem:[%s300 + $0x380] sm:$0xff]
        %v786 = vld [vmem:[%s300 + $0x388] sm:$0xff]
        %v787 = vld [vmem:[%s300 + $0x390] sm:$0xff]
        %v788 = vld [vmem:[%s300 + $0x398] sm:$0xff]
        %v789 = vld [vmem:[%s300 + $0x3a0] sm:$0xff]
        %v790 = vld [vmem:[%s300 + $0x3a8] sm:$0xff]
        %v791 = vld [vmem:[%s300 + $0x3b0] sm:$0xff]
        %v792 = vld [vmem:[%s300 + $0x3b8] sm:$0xff]
        %v793 = vld [vmem:[%s300 + $0x3c0] sm:$0xff]
        %v794 = vld [vmem:[%s300 + $0x3c8] sm:$0xff]
        %v795 = vld [vmem:[%s300 + $0x3d0] sm:$0xff]
        %v796 = vld [vmem:[%s300 + $0x3d8] sm:$0xff]
        %v797 = vld [vmem:[%s300 + $0x3e0] sm:$0xff]
        %v798 = vld [vmem:[%s300 + $0x3e8] sm:$0xff]
        %v799 = vld [vmem:[%s300 + $0x3f0] sm:$0xff]
        %v800 = vld [vmem:[%s300 + $0x3f8] sm:$0xff]
        %v865 = vunpack.c.l.b16 %v737
        %v866 = vunpack.c.h.b16 %v737
        %v867 = vunpack.c.l.b16 %v738
        %v868 = vunpack.c.h.b16 %v738
        %v869 = vunpack.c.l.b16 %v739
        %v870 = vunpack.c.h.b16 %v739
        %v871 = vunpack.c.l.b16 %v740
        %v872 = vunpack.c.h.b16 %v740
        %v873 = vunpack.c.l.b16 %v741
        %v874 = vunpack.c.h.b16 %v741
        %v875 = vunpack.c.l.b16 %v742
        %v876 = vunpack.c.h.b16 %v742
        %v877 = vunpack.c.l.b16 %v743
        %v878 = vunpack.c.h.b16 %v743
        %v879 = vunpack.c.l.b16 %v744
        %v880 = vunpack.c.h.b16 %v744
        %v881 = vunpack.c.l.b16 %v745
        %v882 = vunpack.c.h.b16 %v745
        %v883 = vunpack.c.l.b16 %v746
        %v884 = vunpack.c.h.b16 %v746
        %v885 = vunpack.c.l.b16 %v747
        %v886 = vunpack.c.h.b16 %v747
        %v887 = vunpack.c.l.b16 %v748
        %v888 = vunpack.c.h.b16 %v748
        %v889 = vunpack.c.l.b16 %v749
        %v890 = vunpack.c.h.b16 %v749
        %v891 = vunpack.c.l.b16 %v750
        %v892 = vunpack.c.h.b16 %v750
        %v893 = vunpack.c.l.b16 %v751
        %v894 = vunpack.c.h.b16 %v751
        %v895 = vunpack.c.l.b16 %v752
        %v896 = vunpack.c.h.b16 %v752
        %v897 = vunpack.c.l.b16 %v753
        %v898 = vunpack.c.h.b16 %v753
        %v899 = vunpack.c.l.b16 %v754
        %v900 = vunpack.c.h.b16 %v754
        %v901 = vunpack.c.l.b16 %v755
        %v902 = vunpack.c.h.b16 %v755
        %v903 = vunpack.c.l.b16 %v756
        %v904 = vunpack.c.h.b16 %v756
        %v905 = vunpack.c.l.b16 %v757
        %v906 = vunpack.c.h.b16 %v757
        %v907 = vunpack.c.l.b16 %v758
        %v908 = vunpack.c.h.b16 %v758
        %v909 = vunpack.c.l.b16 %v759
        %v910 = vunpack.c.h.b16 %v759
        %v911 = vunpack.c.l.b16 %v760
        %v912 = vunpack.c.h.b16 %v760
        %v913 = vunpack.c.l.b16 %v761
        %v914 = vunpack.c.h.b16 %v761
        %v915 = vunpack.c.l.b16 %v762
        %v916 = vunpack.c.h.b16 %v762
        %v917 = vunpack.c.l.b16 %v763
        %v918 = vunpack.c.h.b16 %v763
        %v919 = vunpack.c.l.b16 %v764
        %v920 = vunpack.c.h.b16 %v764
        %v921 = vunpack.c.l.b16 %v765
        %v922 = vunpack.c.h.b16 %v765
        %v923 = vunpack.c.l.b16 %v766
        %v924 = vunpack.c.h.b16 %v766
        %v925 = vunpack.c.l.b16 %v767
        %v926 = vunpack.c.h.b16 %v767
        %v927 = vunpack.c.l.b16 %v768
        %v928 = vunpack.c.h.b16 %v768
        %v929 = vunpack.c.l.b16 %v769
        %v930 = vunpack.c.h.b16 %v769
        %v931 = vunpack.c.l.b16 %v770
        %v932 = vunpack.c.h.b16 %v770
        %v933 = vunpack.c.l.b16 %v771
        %v934 = vunpack.c.h.b16 %v771
        %v935 = vunpack.c.l.b16 %v772
        %v936 = vunpack.c.h.b16 %v772
        %v937 = vunpack.c.l.b16 %v773
        %v938 = vunpack.c.h.b16 %v773
        %v939 = vunpack.c.l.b16 %v774
        %v940 = vunpack.c.h.b16 %v774
        %v941 = vunpack.c.l.b16 %v775
        %v942 = vunpack.c.h.b16 %v775
        %v943 = vunpack.c.l.b16 %v776
        %v944 = vunpack.c.h.b16 %v776
        %v945 = vunpack.c.l.b16 %v777
        %v946 = vunpack.c.h.b16 %v777
        %v947 = vunpack.c.l.b16 %v778
        %v948 = vunpack.c.h.b16 %v778
        %v949 = vunpack.c.l.b16 %v779
        %v950 = vunpack.c.h.b16 %v779
        %v951 = vunpack.c.l.b16 %v780
        %v952 = vunpack.c.h.b16 %v780
        %v953 = vunpack.c.l.b16 %v781
        %v954 = vunpack.c.h.b16 %v781
        %v955 = vunpack.c.l.b16 %v782
        %v956 = vunpack.c.h.b16 %v782
        %v957 = vunpack.c.l.b16 %v783
        %v958 = vunpack.c.h.b16 %v783
        %v959 = vunpack.c.l.b16 %v784
        %v960 = vunpack.c.h.b16 %v784
        %v961 = vunpack.c.l.b16 %v785
        %v962 = vunpack.c.h.b16 %v785
        %v963 = vunpack.c.l.b16 %v786
        %v964 = vunpack.c.h.b16 %v786
        %v965 = vunpack.c.l.b16 %v787
        %v966 = vunpack.c.h.b16 %v787
        %v967 = vunpack.c.l.b16 %v788
        %v968 = vunpack.c.h.b16 %v788
        %v969 = vunpack.c.l.b16 %v789
        %v970 = vunpack.c.h.b16 %v789
        %v971 = vunpack.c.l.b16 %v790
        %v972 = vunpack.c.h.b16 %v790
        %v973 = vunpack.c.l.b16 %v791
        %v974 = vunpack.c.h.b16 %v791
        %v975 = vunpack.c.l.b16 %v792
        %v976 = vunpack.c.h.b16 %v792
        %v977 = vunpack.c.l.b16 %v793
        %v978 = vunpack.c.h.b16 %v793
        %v979 = vunpack.c.l.b16 %v794
        %v980 = vunpack.c.h.b16 %v794
        %v981 = vunpack.c.l.b16 %v795
        %v982 = vunpack.c.h.b16 %v795
        %v983 = vunpack.c.l.b16 %v796
        %v984 = vunpack.c.h.b16 %v796
        %v985 = vunpack.c.l.b16 %v797
        %v986 = vunpack.c.h.b16 %v797
        %v987 = vunpack.c.l.b16 %v798
        %v988 = vunpack.c.h.b16 %v798
        %v989 = vunpack.c.l.b16 %v799
        %v990 = vunpack.c.h.b16 %v799
        %v991 = vunpack.c.l.b16 %v800
        %v992 = vunpack.c.h.b16 %v800
        %v993 = vpack.c.b16 %v867, %v865
        %v994 = vpack.c.b16 %v868, %v866
        %v995 = vpack.c.b16 %v871, %v869
        %v996 = vpack.c.b16 %v872, %v870
        %v997 = vpack.c.b16 %v875, %v873
        %v998 = vpack.c.b16 %v876, %v874
        %v999 = vpack.c.b16 %v879, %v877
        %v1000 = vpack.c.b16 %v880, %v878
        %v1001 = vpack.c.b16 %v883, %v881
        %v1002 = vpack.c.b16 %v884, %v882
        %v1003 = vpack.c.b16 %v887, %v885
        %v1004 = vpack.c.b16 %v888, %v886
        %v1005 = vpack.c.b16 %v891, %v889
        %v1006 = vpack.c.b16 %v892, %v890
        %v1007 = vpack.c.b16 %v895, %v893
        %v1008 = vpack.c.b16 %v896, %v894
        %v1009 = vpack.c.b16 %v899, %v897
        %v1010 = vpack.c.b16 %v900, %v898
        %v1011 = vpack.c.b16 %v903, %v901
        %v1012 = vpack.c.b16 %v904, %v902
        %v1013 = vpack.c.b16 %v907, %v905
        %v1014 = vpack.c.b16 %v908, %v906
        %v1015 = vpack.c.b16 %v911, %v909
        %v1016 = vpack.c.b16 %v912, %v910
        %v1017 = vpack.c.b16 %v915, %v913
        %v1018 = vpack.c.b16 %v916, %v914
        %v1019 = vpack.c.b16 %v919, %v917
        %v1020 = vpack.c.b16 %v920, %v918
        %v1021 = vpack.c.b16 %v923, %v921
        %v1022 = vpack.c.b16 %v924, %v922
        %v1023 = vpack.c.b16 %v927, %v925
        %v1024 = vpack.c.b16 %v928, %v926
        %v1025 = vpack.c.b16 %v931, %v929
        %v1026 = vpack.c.b16 %v932, %v930
        %v1027 = vpack.c.b16 %v935, %v933
        %v1028 = vpack.c.b16 %v936, %v934
        %v1029 = vpack.c.b16 %v939, %v937
        %v1030 = vpack.c.b16 %v940, %v938
        %v1031 = vpack.c.b16 %v943, %v941
        %v1032 = vpack.c.b16 %v944, %v942
        %v1033 = vpack.c.b16 %v947, %v945
        %v1034 = vpack.c.b16 %v948, %v946
        %v1035 = vpack.c.b16 %v951, %v949
        %v1036 = vpack.c.b16 %v952, %v950
        %v1037 = vpack.c.b16 %v955, %v953
        %v1038 = vpack.c.b16 %v956, %v954
        %v1039 = vpack.c.b16 %v959, %v957
        %v1040 = vpack.c.b16 %v960, %v958
        %v1041 = vpack.c.b16 %v963, %v961
        %v1042 = vpack.c.b16 %v964, %v962
        %v1043 = vpack.c.b16 %v967, %v965
        %v1044 = vpack.c.b16 %v968, %v966
        %v1045 = vpack.c.b16 %v971, %v969
        %v1046 = vpack.c.b16 %v972, %v970
        %v1047 = vpack.c.b16 %v975, %v973
        %v1048 = vpack.c.b16 %v976, %v974
        %v1049 = vpack.c.b16 %v979, %v977
        %v1050 = vpack.c.b16 %v980, %v978
        %v1051 = vpack.c.b16 %v983, %v981
        %v1052 = vpack.c.b16 %v984, %v982
        %v1053 = vpack.c.b16 %v987, %v985
        %v1054 = vpack.c.b16 %v988, %v986
        %v1055 = vpack.c.b16 %v991, %v989
        %v1056 = vpack.c.b16 %v992, %v990
        %1121 = vmatprep.subr.bf16.mxu0 %v994
        %1122 = vmatpush1.bf16.msra.mxu0 %v993
        %1123 = vmatprep.subr.bf16.mxu0 %v996
        %1124 = vmatpush1.bf16.msra.mxu0 %v995
        %1125 = vmatprep.subr.bf16.mxu0 %v998
        %1126 = vmatpush1.bf16.msra.mxu0 %v997
        %1127 = vmatprep.subr.bf16.mxu0 %v1000
        %1128 = vmatpush1.bf16.msra.mxu0 %v999
        %1129 = vmatprep.subr.bf16.mxu0 %v1002
        %1130 = vmatpush1.bf16.msra.mxu0 %v1001
        %1131 = vmatprep.subr.bf16.mxu0 %v1004
        %1132 = vmatpush1.bf16.msra.mxu0 %v1003
        %1133 = vmatprep.subr.bf16.mxu0 %v1006
        %1134 = vmatpush1.bf16.msra.mxu0 %v1005
        %1135 = vmatprep.subr.bf16.mxu0 %v1008
        %1136 = vmatpush1.bf16.msra.mxu0 %v1007
        %1137 = vmatprep.subr.bf16.mxu0 %v1010
        %1138 = vmatpush1.bf16.msra.mxu0 %v1009
        %1139 = vmatprep.subr.bf16.mxu0 %v1012
        %1140 = vmatpush1.bf16.msra.mxu0 %v1011
        %1141 = vmatprep.subr.bf16.mxu0 %v1014
        %1142 = vmatpush1.bf16.msra.mxu0 %v1013
        %1143 = vmatprep.subr.bf16.mxu0 %v1016
        %1144 = vmatpush1.bf16.msra.mxu0 %v1015
        %1145 = vmatprep.subr.bf16.mxu0 %v1018
        %1146 = vmatpush1.bf16.msra.mxu0 %v1017
        %1147 = vmatprep.subr.bf16.mxu0 %v1020
        %1148 = vmatpush1.bf16.msra.mxu0 %v1019
        %1149 = vmatprep.subr.bf16.mxu0 %v1022
        %1150 = vmatpush1.bf16.msra.mxu0 %v1021
        %1151 = vmatprep.subr.bf16.mxu0 %v1024
        %1152 = vmatpush1.bf16.msra.mxu0 %v1023
        %1153 = vmatprep.mubr.bf16.mxu0 %v734
        %1154 = vmatmul.mubr.bf16.gmra.mrb[0].mxu0 %v733
        %v1155 = vpop.f32.mrb[0].mxu0
        %v1156 = vadd.f32 0.0, %v1155
        %v1157 = vpop.f32.mrb[0].mxu0
        %v1158 = vadd.f32 0.0, %v1157
        %v1159 = vpop.f32.mrb[0].mxu0
        %v1160 = vpop.f32.mrb[0].mxu0
        %1161 = vdwg.mxu0
        %1162 = vmatprep.subr.bf16.mxu0 %v1026
        %1163 = vmatpush1.bf16.msra.mxu0 %v1025
        %1164 = vmatprep.subr.bf16.mxu0 %v1028
        %1165 = vmatpush1.bf16.msra.mxu0 %v1027
        %1166 = vmatprep.subr.bf16.mxu0 %v1030
        %1167 = vmatpush1.bf16.msra.mxu0 %v1029
        %1168 = vmatprep.subr.bf16.mxu0 %v1032
        %1169 = vmatpush1.bf16.msra.mxu0 %v1031
        %1170 = vmatprep.subr.bf16.mxu0 %v1034
        %1171 = vmatpush1.bf16.msra.mxu0 %v1033
        %1172 = vmatprep.subr.bf16.mxu0 %v1036
        %1173 = vmatpush1.bf16.msra.mxu0 %v1035
        %1174 = vmatprep.subr.bf16.mxu0 %v1038
        %1175 = vmatpush1.bf16.msra.mxu0 %v1037
        %1176 = vmatprep.subr.bf16.mxu0 %v1040
        %1177 = vmatpush1.bf16.msra.mxu0 %v1039
        %1178 = vmatprep.subr.bf16.mxu0 %v1042
        %1179 = vmatpush1.bf16.msra.mxu0 %v1041
        %1180 = vmatprep.subr.bf16.mxu0 %v1044
        %1181 = vmatpush1.bf16.msra.mxu0 %v1043
        %1182 = vmatprep.subr.bf16.mxu0 %v1046
        %1183 = vmatpush1.bf16.msra.mxu0 %v1045
        %1184 = vmatprep.subr.bf16.mxu0 %v1048
        %1185 = vmatpush1.bf16.msra.mxu0 %v1047
        %1186 = vmatprep.subr.bf16.mxu0 %v1050
        %1187 = vmatpush1.bf16.msra.mxu0 %v1049
        %1188 = vmatprep.subr.bf16.mxu0 %v1052
        %1189 = vmatpush1.bf16.msra.mxu0 %v1051
        %1190 = vmatprep.subr.bf16.mxu0 %v1054
        %1191 = vmatpush1.bf16.msra.mxu0 %v1053
        %1192 = vmatprep.subr.bf16.mxu0 %v1056
        %1193 = vmatpush1.bf16.msra.mxu0 %v1055
        %1194 = vmatprep.mubr.bf16.mxu0 %v736
        %1195 = vmatmul.mubr.bf16.gmra.mrb[0].mxu0 %v735
        %v1196 = vpop.f32.mrb[0].mxu0
        %v1197 = vadd.f32 %v1156, %v1196
        %v1198 = vpop.f32.mrb[0].mxu0
        %v1199 = vadd.f32 %v1158, %v1198
        %v1200 = vpop.f32.mrb[0].mxu0
        %v1201 = vpop.f32.mrb[0].mxu0
        %1202 = vdwg.mxu0
        %v1267 = vunpack.c.l.b16 %v578
        %v1268 = vunpack.c.h.b16 %v578
        %v1269 = vunpack.c.l.b16 %v579
        %v1270 = vunpack.c.h.b16 %v579
        %v1271 = vunpack.c.l.b16 %v580
        %v1272 = vunpack.c.h.b16 %v580
        %v1273 = vunpack.c.l.b16 %v581
        %v1274 = vunpack.c.h.b16 %v581
        %v1275 = vunpack.c.l.b16 %v582
        %v1276 = vunpack.c.h.b16 %v582
        %v1277 = vunpack.c.l.b16 %v583
        %v1278 = vunpack.c.h.b16 %v583
        %v1279 = vunpack.c.l.b16 %v584
        %v1280 = vunpack.c.h.b16 %v584
        %v1281 = vunpack.c.l.b16 %v585
        %v1282 = vunpack.c.h.b16 %v585
        %v1283 = vunpack.c.l.b16 %v586
        %v1284 = vunpack.c.h.b16 %v586
        %v1285 = vunpack.c.l.b16 %v587
        %v1286 = vunpack.c.h.b16 %v587
        %v1287 = vunpack.c.l.b16 %v588
        %v1288 = vunpack.c.h.b16 %v588
        %v1289 = vunpack.c.l.b16 %v589
        %v1290 = vunpack.c.h.b16 %v589
        %v1291 = vunpack.c.l.b16 %v590
        %v1292 = vunpack.c.h.b16 %v590
        %v1293 = vunpack.c.l.b16 %v591
        %v1294 = vunpack.c.h.b16 %v591
        %v1295 = vunpack.c.l.b16 %v592
        %v1296 = vunpack.c.h.b16 %v592
        %v1297 = vunpack.c.l.b16 %v593
        %v1298 = vunpack.c.h.b16 %v593
        %v1299 = vunpack.c.l.b16 %v594
        %v1300 = vunpack.c.h.b16 %v594
        %v1301 = vunpack.c.l.b16 %v595
        %v1302 = vunpack.c.h.b16 %v595
        %v1303 = vunpack.c.l.b16 %v596
        %v1304 = vunpack.c.h.b16 %v596
        %v1305 = vunpack.c.l.b16 %v597
        %v1306 = vunpack.c.h.b16 %v597
        %v1307 = vunpack.c.l.b16 %v598
        %v1308 = vunpack.c.h.b16 %v598
        %v1309 = vunpack.c.l.b16 %v599
        %v1310 = vunpack.c.h.b16 %v599
        %v1311 = vunpack.c.l.b16 %v600
        %v1312 = vunpack.c.h.b16 %v600
        %v1313 = vunpack.c.l.b16 %v601
        %v1314 = vunpack.c.h.b16 %v601
        %v1315 = vunpack.c.l.b16 %v602
        %v1316 = vunpack.c.h.b16 %v602
        %v1317 = vunpack.c.l.b16 %v603
        %v1318 = vunpack.c.h.b16 %v603
        %v1319 = vunpack.c.l.b16 %v604
        %v1320 = vunpack.c.h.b16 %v604
        %v1321 = vunpack.c.l.b16 %v605
        %v1322 = vunpack.c.h.b16 %v605
        %v1323 = vunpack.c.l.b16 %v606
        %v1324 = vunpack.c.h.b16 %v606
        %v1325 = vunpack.c.l.b16 %v607
        %v1326 = vunpack.c.h.b16 %v607
        %v1327 = vunpack.c.l.b16 %v608
        %v1328 = vunpack.c.h.b16 %v608
        %v1329 = vunpack.c.l.b16 %v609
        %v1330 = vunpack.c.h.b16 %v609
        %v1331 = vunpack.c.l.b16 %v610
        %v1332 = vunpack.c.h.b16 %v610
        %v1333 = vunpack.c.l.b16 %v611
        %v1334 = vunpack.c.h.b16 %v611
        %v1335 = vunpack.c.l.b16 %v612
        %v1336 = vunpack.c.h.b16 %v612
        %v1337 = vunpack.c.l.b16 %v613
        %v1338 = vunpack.c.h.b16 %v613
        %v1339 = vunpack.c.l.b16 %v614
        %v1340 = vunpack.c.h.b16 %v614
        %v1341 = vunpack.c.l.b16 %v615
        %v1342 = vunpack.c.h.b16 %v615
        %v1343 = vunpack.c.l.b16 %v616
        %v1344 = vunpack.c.h.b16 %v616
        %v1345 = vunpack.c.l.b16 %v617
        %v1346 = vunpack.c.h.b16 %v617
        %v1347 = vunpack.c.l.b16 %v618
        %v1348 = vunpack.c.h.b16 %v618
        %v1349 = vunpack.c.l.b16 %v619
        %v1350 = vunpack.c.h.b16 %v619
        %v1351 = vunpack.c.l.b16 %v620
        %v1352 = vunpack.c.h.b16 %v620
        %v1353 = vunpack.c.l.b16 %v621
        %v1354 = vunpack.c.h.b16 %v621
        %v1355 = vunpack.c.l.b16 %v622
        %v1356 = vunpack.c.h.b16 %v622
        %v1357 = vunpack.c.l.b16 %v623
        %v1358 = vunpack.c.h.b16 %v623
        %v1359 = vunpack.c.l.b16 %v624
        %v1360 = vunpack.c.h.b16 %v624
        %v1361 = vunpack.c.l.b16 %v625
        %v1362 = vunpack.c.h.b16 %v625
        %v1363 = vunpack.c.l.b16 %v626
        %v1364 = vunpack.c.h.b16 %v626
        %v1365 = vunpack.c.l.b16 %v627
        %v1366 = vunpack.c.h.b16 %v627
        %v1367 = vunpack.c.l.b16 %v628
        %v1368 = vunpack.c.h.b16 %v628
        %v1369 = vunpack.c.l.b16 %v629
        %v1370 = vunpack.c.h.b16 %v629
        %v1371 = vunpack.c.l.b16 %v630
        %v1372 = vunpack.c.h.b16 %v630
        %v1373 = vunpack.c.l.b16 %v631
        %v1374 = vunpack.c.h.b16 %v631
        %v1375 = vunpack.c.l.b16 %v632
        %v1376 = vunpack.c.h.b16 %v632
        %v1377 = vunpack.c.l.b16 %v633
        %v1378 = vunpack.c.h.b16 %v633
        %v1379 = vunpack.c.l.b16 %v634
        %v1380 = vunpack.c.h.b16 %v634
        %v1381 = vunpack.c.l.b16 %v635
        %v1382 = vunpack.c.h.b16 %v635
        %v1383 = vunpack.c.l.b16 %v636
        %v1384 = vunpack.c.h.b16 %v636
        %v1385 = vunpack.c.l.b16 %v637
        %v1386 = vunpack.c.h.b16 %v637
        %v1387 = vunpack.c.l.b16 %v638
        %v1388 = vunpack.c.h.b16 %v638
        %v1389 = vunpack.c.l.b16 %v639
        %v1390 = vunpack.c.h.b16 %v639
        %v1391 = vunpack.c.l.b16 %v640
        %v1392 = vunpack.c.h.b16 %v640
        %v1393 = vunpack.c.l.b16 %v641
        %v1394 = vunpack.c.h.b16 %v641
        %v1395 = vpack.c.b16 %v1269, %v1267
        %v1396 = vpack.c.b16 %v1270, %v1268
        %v1397 = vpack.c.b16 %v1273, %v1271
        %v1398 = vpack.c.b16 %v1274, %v1272
        %v1399 = vpack.c.b16 %v1277, %v1275
        %v1400 = vpack.c.b16 %v1278, %v1276
        %v1401 = vpack.c.b16 %v1281, %v1279
        %v1402 = vpack.c.b16 %v1282, %v1280
        %v1403 = vpack.c.b16 %v1285, %v1283
        %v1404 = vpack.c.b16 %v1286, %v1284
        %v1405 = vpack.c.b16 %v1289, %v1287
        %v1406 = vpack.c.b16 %v1290, %v1288
        %v1407 = vpack.c.b16 %v1293, %v1291
        %v1408 = vpack.c.b16 %v1294, %v1292
        %v1409 = vpack.c.b16 %v1297, %v1295
        %v1410 = vpack.c.b16 %v1298, %v1296
        %v1411 = vpack.c.b16 %v1301, %v1299
        %v1412 = vpack.c.b16 %v1302, %v1300
        %v1413 = vpack.c.b16 %v1305, %v1303
        %v1414 = vpack.c.b16 %v1306, %v1304
        %v1415 = vpack.c.b16 %v1309, %v1307
        %v1416 = vpack.c.b16 %v1310, %v1308
        %v1417 = vpack.c.b16 %v1313, %v1311
        %v1418 = vpack.c.b16 %v1314, %v1312
        %v1419 = vpack.c.b16 %v1317, %v1315
        %v1420 = vpack.c.b16 %v1318, %v1316
        %v1421 = vpack.c.b16 %v1321, %v1319
        %v1422 = vpack.c.b16 %v1322, %v1320
        %v1423 = vpack.c.b16 %v1325, %v1323
        %v1424 = vpack.c.b16 %v1326, %v1324
        %v1425 = vpack.c.b16 %v1329, %v1327
        %v1426 = vpack.c.b16 %v1330, %v1328
        %v1427 = vpack.c.b16 %v1333, %v1331
        %v1428 = vpack.c.b16 %v1334, %v1332
        %v1429 = vpack.c.b16 %v1337, %v1335
        %v1430 = vpack.c.b16 %v1338, %v1336
        %v1431 = vpack.c.b16 %v1341, %v1339
        %v1432 = vpack.c.b16 %v1342, %v1340
        %v1433 = vpack.c.b16 %v1345, %v1343
        %v1434 = vpack.c.b16 %v1346, %v1344
        %v1435 = vpack.c.b16 %v1349, %v1347
        %v1436 = vpack.c.b16 %v1350, %v1348
        %v1437 = vpack.c.b16 %v1353, %v1351
        %v1438 = vpack.c.b16 %v1354, %v1352
        %v1439 = vpack.c.b16 %v1357, %v1355
        %v1440 = vpack.c.b16 %v1358, %v1356
        %v1441 = vpack.c.b16 %v1361, %v1359
        %v1442 = vpack.c.b16 %v1362, %v1360
        %v1443 = vpack.c.b16 %v1365, %v1363
        %v1444 = vpack.c.b16 %v1366, %v1364
        %v1445 = vpack.c.b16 %v1369, %v1367
        %v1446 = vpack.c.b16 %v1370, %v1368
        %v1447 = vpack.c.b16 %v1373, %v1371
        %v1448 = vpack.c.b16 %v1374, %v1372
        %v1449 = vpack.c.b16 %v1377, %v1375
        %v1450 = vpack.c.b16 %v1378, %v1376
        %v1451 = vpack.c.b16 %v1381, %v1379
        %v1452 = vpack.c.b16 %v1382, %v1380
        %v1453 = vpack.c.b16 %v1385, %v1383
        %v1454 = vpack.c.b16 %v1386, %v1384
        %v1455 = vpack.c.b16 %v1389, %v1387
        %v1456 = vpack.c.b16 %v1390, %v1388
        %v1457 = vpack.c.b16 %v1393, %v1391
        %v1458 = vpack.c.b16 %v1394, %v1392
        %1523 = vmatprep.subr.bf16.mxu0 %v1396
        %1524 = vmatpush1.bf16.msra.mxu0 %v1395
        %1525 = vmatprep.subr.bf16.mxu0 %v1398
        %1526 = vmatpush1.bf16.msra.mxu0 %v1397
        %1527 = vmatprep.subr.bf16.mxu0 %v1400
        %1528 = vmatpush1.bf16.msra.mxu0 %v1399
        %1529 = vmatprep.subr.bf16.mxu0 %v1402
        %1530 = vmatpush1.bf16.msra.mxu0 %v1401
        %1531 = vmatprep.subr.bf16.mxu0 %v1404
        %1532 = vmatpush1.bf16.msra.mxu0 %v1403
        %1533 = vmatprep.subr.bf16.mxu0 %v1406
        %1534 = vmatpush1.bf16.msra.mxu0 %v1405
        %1535 = vmatprep.subr.bf16.mxu0 %v1408
        %1536 = vmatpush1.bf16.msra.mxu0 %v1407
        %1537 = vmatprep.subr.bf16.mxu0 %v1410
        %1538 = vmatpush1.bf16.msra.mxu0 %v1409
        %1539 = vmatprep.subr.bf16.mxu0 %v1412
        %1540 = vmatpush1.bf16.msra.mxu0 %v1411
        %1541 = vmatprep.subr.bf16.mxu0 %v1414
        %1542 = vmatpush1.bf16.msra.mxu0 %v1413
        %1543 = vmatprep.subr.bf16.mxu0 %v1416
        %1544 = vmatpush1.bf16.msra.mxu0 %v1415
        %1545 = vmatprep.subr.bf16.mxu0 %v1418
        %1546 = vmatpush1.bf16.msra.mxu0 %v1417
        %1547 = vmatprep.subr.bf16.mxu0 %v1420
        %1548 = vmatpush1.bf16.msra.mxu0 %v1419
        %1549 = vmatprep.subr.bf16.mxu0 %v1422
        %1550 = vmatpush1.bf16.msra.mxu0 %v1421
        %1551 = vmatprep.subr.bf16.mxu0 %v1424
        %1552 = vmatpush1.bf16.msra.mxu0 %v1423
        %1553 = vmatprep.subr.bf16.mxu0 %v1426
        %1554 = vmatpush1.bf16.msra.mxu0 %v1425
        %1555 = vmatprep.mubr.bf16.mxu0 %v575
        %1556 = vmatmul.mubr.bf16.gmra.mrb[0].mxu0 %v574
        %v1557 = vpop.f32.mrb[0].mxu0
        %v1558 = vadd.f32 %v1197, %v1557
        %v1559 = vpop.f32.mrb[0].mxu0
        %v1560 = vadd.f32 %v1199, %v1559
        %v1561 = vpop.f32.mrb[0].mxu0
        %v1562 = vpop.f32.mrb[0].mxu0
        %1563 = vdwg.mxu0
        %1564 = vmatprep.subr.bf16.mxu0 %v1428
        %1565 = vmatpush1.bf16.msra.mxu0 %v1427
        %1566 = vmatprep.subr.bf16.mxu0 %v1430
        %1567 = vmatpush1.bf16.msra.mxu0 %v1429
        %1568 = vmatprep.subr.bf16.mxu0 %v1432
        %1569 = vmatpush1.bf16.msra.mxu0 %v1431
        %1570 = vmatprep.subr.bf16.mxu0 %v1434
        %1571 = vmatpush1.bf16.msra.mxu0 %v1433
        %1572 = vmatprep.subr.bf16.mxu0 %v1436
        %1573 = vmatpush1.bf16.msra.mxu0 %v1435
        %1574 = vmatprep.subr.bf16.mxu0 %v1438
        %1575 = vmatpush1.bf16.msra.mxu0 %v1437
        %1576 = vmatprep.subr.bf16.mxu0 %v1440
        %1577 = vmatpush1.bf16.msra.mxu0 %v1439
        %1578 = vmatprep.subr.bf16.mxu0 %v1442
        %1579 = vmatpush1.bf16.msra.mxu0 %v1441
        %1580 = vmatprep.subr.bf16.mxu0 %v1444
        %1581 = vmatpush1.bf16.msra.mxu0 %v1443
        %1582 = vmatprep.subr.bf16.mxu0 %v1446
        %1583 = vmatpush1.bf16.msra.mxu0 %v1445
        %1584 = vmatprep.subr.bf16.mxu0 %v1448
        %1585 = vmatpush1.bf16.msra.mxu0 %v1447
        %1586 = vmatprep.subr.bf16.mxu0 %v1450
        %1587 = vmatpush1.bf16.msra.mxu0 %v1449
        %1588 = vmatprep.subr.bf16.mxu0 %v1452
        %1589 = vmatpush1.bf16.msra.mxu0 %v1451
        %1590 = vmatprep.subr.bf16.mxu0 %v1454
        %1591 = vmatpush1.bf16.msra.mxu0 %v1453
        %1592 = vmatprep.subr.bf16.mxu0 %v1456
        %1593 = vmatpush1.bf16.msra.mxu0 %v1455
        %1594 = vmatprep.subr.bf16.mxu0 %v1458
        %1595 = vmatpush1.bf16.msra.mxu0 %v1457
        %1596 = vmatprep.mubr.bf16.mxu0 %v577
        %1597 = vmatmul.mubr.bf16.gmra.mrb[0].mxu0 %v576
        %v1598 = vpop.f32.mrb[0].mxu0
        %v1599 = vadd.f32 %v1558, %v1598
        %v1600 = vpop.f32.mrb[0].mxu0
        %v1601 = vadd.f32 %v1560, %v1600
        %v1602 = vpop.f32.mrb[0].mxu0
        %v1603 = vpop.f32.mrb[0].mxu0
        %1604 = vdwg.mxu0
        %s1605 = scalar_lea.vmem %s283, 8 [#allocation2]
        %v1606 = vld [vmem:[%s1605] sm:$0xf]
        %v1608 = vsel %vm471, %v1606, 0
        %1610 = vmatprep.subr.bf16.mxu0 %v436
        %1611 = vmatpush1.bf16.msra.mxu0 %v435
        %1612 = vmatprep.subr.bf16.mxu0 %v440
        %1613 = vmatpush1.bf16.msra.mxu0 %v439
        %1614 = vmatprep.subr.bf16.mxu0 %v444
        %1615 = vmatpush1.bf16.msra.mxu0 %v443
        %1616 = vmatprep.subr.bf16.mxu0 %v448
        %1617 = vmatpush1.bf16.msra.mxu0 %v447
        %1618 = vmatprep.subr.bf16.mxu0 %v480
        %1619 = vmatpush1.bf16.msra.mxu0 %v477
        %1620 = vmatprep.subr.bf16.mxu0 0
        %1621 = vmatpush1.bf16.msra.mxu0 0
        %1622 = vmatprep.subr.bf16.mxu0 0
        %1623 = vmatpush1.bf16.msra.mxu0 0
        %1624 = vmatprep.subr.bf16.mxu0 0
        %1625 = vmatpush1.bf16.msra.mxu0 0
        %1626 = vmatprep.subr.bf16.mxu0 0
        %1627 = vmatpush1.bf16.msra.mxu0 0
        %1628 = vmatprep.subr.bf16.mxu0 0
        %1629 = vmatpush1.bf16.msra.mxu0 0
        %1630 = vmatprep.subr.bf16.mxu0 0
        %1631 = vmatpush1.bf16.msra.mxu0 0
        %1632 = vmatprep.subr.bf16.mxu0 0
        %1633 = vmatpush1.bf16.msra.mxu0 0
        %1634 = vmatprep.subr.bf16.mxu0 0
        %1635 = vmatpush1.bf16.msra.mxu0 0
        %1636 = vmatprep.subr.bf16.mxu0 0
        %1637 = vmatpush1.bf16.msra.mxu0 0
        %1638 = vmatprep.subr.bf16.mxu0 0
        %1639 = vmatpush1.bf16.msra.mxu0 0
        %1640 = vmatprep.subr.bf16.mxu0 0
        %1641 = vmatpush1.bf16.msra.mxu0 0
        %1642 = vmatprep.mubr.bf16.mxu0 0
        %1643 = vmatmul.mubr.bf16.gmra.mrb[0].mxu0 %v1608
        %v1644 = vpop.f32.mrb[0].mxu0
        %v1645 = vadd.f32 %v364, %v1644
        %v1646 = vpop.f32.mrb[0].mxu0
        %v1647 = vadd.f32 %v368, %v1646
        %v1648 = vpop.f32.mrb[0].mxu0
        %v1649 = vpop.f32.mrb[0].mxu0
        %1650 = vdwg.mxu0
        %1651 = vmatprep.subr.bf16.mxu0 %v438
        %1652 = vmatpush1.bf16.msra.mxu0 %v437
        %1653 = vmatprep.subr.bf16.mxu0 %v442
        %1654 = vmatpush1.bf16.msra.mxu0 %v441
        %1655 = vmatprep.subr.bf16.mxu0 %v446
        %1656 = vmatpush1.bf16.msra.mxu0 %v445
        %1657 = vmatprep.subr.bf16.mxu0 %v450
        %1658 = vmatpush1.bf16.msra.mxu0 %v449
        %1659 = vmatprep.subr.bf16.mxu0 %v486
        %1660 = vmatpush1.bf16.msra.mxu0 %v483
        %1661 = vmatprep.subr.bf16.mxu0 0
        %1662 = vmatpush1.bf16.msra.mxu0 0
        %1663 = vmatprep.subr.bf16.mxu0 0
        %1664 = vmatpush1.bf16.msra.mxu0 0
        %1665 = vmatprep.subr.bf16.mxu0 0
        %1666 = vmatpush1.bf16.msra.mxu0 0
        %1667 = vmatprep.subr.bf16.mxu0 0
        %1668 = vmatpush1.bf16.msra.mxu0 0
        %1669 = vmatprep.subr.bf16.mxu0 0
        %1670 = vmatpush1.bf16.msra.mxu0 0
        %1671 = vmatprep.subr.bf16.mxu0 0
        %1672 = vmatpush1.bf16.msra.mxu0 0
        %1673 = vmatprep.subr.bf16.mxu0 0
        %1674 = vmatpush1.bf16.msra.mxu0 0
        %1675 = vmatprep.subr.bf16.mxu0 0
        %1676 = vmatpush1.bf16.msra.mxu0 0
        %1677 = vmatprep.subr.bf16.mxu0 0
        %1678 = vmatpush1.bf16.msra.mxu0 0
        %1679 = vmatprep.subr.bf16.mxu0 0
        %1680 = vmatpush1.bf16.msra.mxu0 0
        %1681 = vmatprep.subr.bf16.mxu0 0
        %1682 = vmatpush1.bf16.msra.mxu0 0
        %1683 = vmatprep.mubr.bf16.mxu0 0
        %1684 = vmatmul.mubr.bf16.gmra.mrb[0].mxu0 %v1608
        %v1685 = vpop.f32.mrb[0].mxu0
        %v1686 = vadd.f32 %v372, %v1685
        %v1687 = vpop.f32.mrb[0].mxu0
        %v1688 = vadd.f32 %v376, %v1687
        %v1689 = vpop.f32.mrb[0].mxu0
        %v1690 = vpop.f32.mrb[0].mxu0
        %1691 = vdwg.mxu0
        %v1692 = vmax.f32 %v1645, 0.0
        %v1693 = vmax.f32 %v1647, 0.0
        %v1694 = vmax.f32 %v1686, 0.0
        %v1695 = vmax.f32 %v1688, 0.0
        %v1696 = vpack.c.bf16 %v1692, %v1692
        %v1697 = vpack.c.bf16 %v1693, %v1693
        %v1698 = vpack.c.bf16 %v1694, %v1694
        %v1699 = vpack.c.bf16 %v1695, %v1695
        %v1700 = vld [vmem:[%s300 + $0x400] sm:$0xff]
        %v1701 = vld [vmem:[%s300 + $0x408] sm:$0xff]
        %v1702 = vld [vmem:[%s300 + $0x410] sm:$0xff]
        %v1703 = vld [vmem:[%s300 + $0x418] sm:$0xff]
        %v1704 = vld [vmem:[%s300 + $0x420] sm:$0xff]
        %v1705 = vld [vmem:[%s300 + $0x428] sm:$0xff]
        %v1706 = vld [vmem:[%s300 + $0x430] sm:$0xff]
        %v1707 = vld [vmem:[%s300 + $0x438] sm:$0xff]
        %v1708 = vld [vmem:[%s300 + $0x440] sm:$0xff]
        %v1709 = vld [vmem:[%s300 + $0x448] sm:$0xff]
        %v1710 = vld [vmem:[%s300 + $0x450] sm:$0xff]
        %v1711 = vld [vmem:[%s300 + $0x458] sm:$0xff]
        %v1712 = vld [vmem:[%s300 + $0x460] sm:$0xff]
        %v1713 = vld [vmem:[%s300 + $0x468] sm:$0xff]
        %v1714 = vld [vmem:[%s300 + $0x470] sm:$0xff]
        %v1715 = vld [vmem:[%s300 + $0x478] sm:$0xff]
        %v1716 = vld [vmem:[%s300 + $0x480] sm:$0xff]
        %v1717 = vld [vmem:[%s300 + $0x488] sm:$0xff]
        %v1718 = vld [vmem:[%s300 + $0x490] sm:$0xff]
        %v1719 = vld [vmem:[%s300 + $0x498] sm:$0xff]
        %v1720 = vld [vmem:[%s300 + $0x4a0] sm:$0xff]
        %v1721 = vld [vmem:[%s300 + $0x4a8] sm:$0xff]
        %v1722 = vld [vmem:[%s300 + $0x4b0] sm:$0xff]
        %v1723 = vld [vmem:[%s300 + $0x4b8] sm:$0xff]
        %v1724 = vld [vmem:[%s300 + $0x4c0] sm:$0xff]
        %v1725 = vld [vmem:[%s300 + $0x4c8] sm:$0xff]
        %v1726 = vld [vmem:[%s300 + $0x4d0] sm:$0xff]
        %v1727 = vld [vmem:[%s300 + $0x4d8] sm:$0xff]
        %v1728 = vld [vmem:[%s300 + $0x4e0] sm:$0xff]
        %v1729 = vld [vmem:[%s300 + $0x4e8] sm:$0xff]
        %v1730 = vld [vmem:[%s300 + $0x4f0] sm:$0xff]
        %v1731 = vld [vmem:[%s300 + $0x4f8] sm:$0xff]
        %v1732 = vld [vmem:[%s300 + $0x500] sm:$0xff]
        %v1733 = vld [vmem:[%s300 + $0x508] sm:$0xff]
        %v1734 = vld [vmem:[%s300 + $0x510] sm:$0xff]
        %v1735 = vld [vmem:[%s300 + $0x518] sm:$0xff]
        %v1736 = vld [vmem:[%s300 + $0x520] sm:$0xff]
        %v1737 = vld [vmem:[%s300 + $0x528] sm:$0xff]
        %v1738 = vld [vmem:[%s300 + $0x530] sm:$0xff]
        %v1739 = vld [vmem:[%s300 + $0x538] sm:$0xff]
        %v1740 = vld [vmem:[%s300 + $0x540] sm:$0xff]
        %v1741 = vld [vmem:[%s300 + $0x548] sm:$0xff]
        %v1742 = vld [vmem:[%s300 + $0x550] sm:$0xff]
        %v1743 = vld [vmem:[%s300 + $0x558] sm:$0xff]
        %v1744 = vld [vmem:[%s300 + $0x560] sm:$0xff]
        %v1745 = vld [vmem:[%s300 + $0x568] sm:$0xff]
        %v1746 = vld [vmem:[%s300 + $0x570] sm:$0xff]
        %v1747 = vld [vmem:[%s300 + $0x578] sm:$0xff]
        %v1748 = vld [vmem:[%s300 + $0x580] sm:$0xff]
        %v1749 = vld [vmem:[%s300 + $0x588] sm:$0xff]
        %v1750 = vld [vmem:[%s300 + $0x590] sm:$0xff]
        %v1751 = vld [vmem:[%s300 + $0x598] sm:$0xff]
        %v1752 = vld [vmem:[%s300 + $0x5a0] sm:$0xff]
        %v1753 = vld [vmem:[%s300 + $0x5a8] sm:$0xff]
        %v1754 = vld [vmem:[%s300 + $0x5b0] sm:$0xff]
        %v1755 = vld [vmem:[%s300 + $0x5b8] sm:$0xff]
        %v1756 = vld [vmem:[%s300 + $0x5c0] sm:$0xff]
        %v1757 = vld [vmem:[%s300 + $0x5c8] sm:$0xff]
        %v1758 = vld [vmem:[%s300 + $0x5d0] sm:$0xff]
        %v1759 = vld [vmem:[%s300 + $0x5d8] sm:$0xff]
        %v1760 = vld [vmem:[%s300 + $0x5e0] sm:$0xff]
        %v1761 = vld [vmem:[%s300 + $0x5e8] sm:$0xff]
        %v1762 = vld [vmem:[%s300 + $0x5f0] sm:$0xff]
        %v1763 = vld [vmem:[%s300 + $0x5f8] sm:$0xff]
        %v1828 = vunpack.c.l.b16 %v1700
        %v1829 = vunpack.c.h.b16 %v1700
        %v1830 = vunpack.c.l.b16 %v1701
        %v1831 = vunpack.c.h.b16 %v1701
        %v1832 = vunpack.c.l.b16 %v1702
        %v1833 = vunpack.c.h.b16 %v1702
        %v1834 = vunpack.c.l.b16 %v1703
        %v1835 = vunpack.c.h.b16 %v1703
        %v1836 = vunpack.c.l.b16 %v1704
        %v1837 = vunpack.c.h.b16 %v1704
        %v1838 = vunpack.c.l.b16 %v1705
        %v1839 = vunpack.c.h.b16 %v1705
        %v1840 = vunpack.c.l.b16 %v1706
        %v1841 = vunpack.c.h.b16 %v1706
        %v1842 = vunpack.c.l.b16 %v1707
        %v1843 = vunpack.c.h.b16 %v1707
        %v1844 = vunpack.c.l.b16 %v1708
        %v1845 = vunpack.c.h.b16 %v1708
        %v1846 = vunpack.c.l.b16 %v1709
        %v1847 = vunpack.c.h.b16 %v1709
        %v1848 = vunpack.c.l.b16 %v1710
        %v1849 = vunpack.c.h.b16 %v1710
        %v1850 = vunpack.c.l.b16 %v1711
        %v1851 = vunpack.c.h.b16 %v1711
        %v1852 = vunpack.c.l.b16 %v1712
        %v1853 = vunpack.c.h.b16 %v1712
        %v1854 = vunpack.c.l.b16 %v1713
        %v1855 = vunpack.c.h.b16 %v1713
        %v1856 = vunpack.c.l.b16 %v1714
        %v1857 = vunpack.c.h.b16 %v1714
        %v1858 = vunpack.c.l.b16 %v1715
        %v1859 = vunpack.c.h.b16 %v1715
        %v1860 = vunpack.c.l.b16 %v1716
        %v1861 = vunpack.c.h.b16 %v1716
        %v1862 = vunpack.c.l.b16 %v1717
        %v1863 = vunpack.c.h.b16 %v1717
        %v1864 = vunpack.c.l.b16 %v1718
        %v1865 = vunpack.c.h.b16 %v1718
        %v1866 = vunpack.c.l.b16 %v1719
        %v1867 = vunpack.c.h.b16 %v1719
        %v1868 = vunpack.c.l.b16 %v1720
        %v1869 = vunpack.c.h.b16 %v1720
        %v1870 = vunpack.c.l.b16 %v1721
        %v1871 = vunpack.c.h.b16 %v1721
        %v1872 = vunpack.c.l.b16 %v1722
        %v1873 = vunpack.c.h.b16 %v1722
        %v1874 = vunpack.c.l.b16 %v1723
        %v1875 = vunpack.c.h.b16 %v1723
        %v1876 = vunpack.c.l.b16 %v1724
        %v1877 = vunpack.c.h.b16 %v1724
        %v1878 = vunpack.c.l.b16 %v1725
        %v1879 = vunpack.c.h.b16 %v1725
        %v1880 = vunpack.c.l.b16 %v1726
        %v1881 = vunpack.c.h.b16 %v1726
        %v1882 = vunpack.c.l.b16 %v1727
        %v1883 = vunpack.c.h.b16 %v1727
        %v1884 = vunpack.c.l.b16 %v1728
        %v1885 = vunpack.c.h.b16 %v1728
        %v1886 = vunpack.c.l.b16 %v1729
        %v1887 = vunpack.c.h.b16 %v1729
        %v1888 = vunpack.c.l.b16 %v1730
        %v1889 = vunpack.c.h.b16 %v1730
        %v1890 = vunpack.c.l.b16 %v1731
        %v1891 = vunpack.c.h.b16 %v1731
        %v1892 = vunpack.c.l.b16 %v1732
        %v1893 = vunpack.c.h.b16 %v1732
        %v1894 = vunpack.c.l.b16 %v1733
        %v1895 = vunpack.c.h.b16 %v1733
        %v1896 = vunpack.c.l.b16 %v1734
        %v1897 = vunpack.c.h.b16 %v1734
        %v1898 = vunpack.c.l.b16 %v1735
        %v1899 = vunpack.c.h.b16 %v1735
        %v1900 = vunpack.c.l.b16 %v1736
        %v1901 = vunpack.c.h.b16 %v1736
        %v1902 = vunpack.c.l.b16 %v1737
        %v1903 = vunpack.c.h.b16 %v1737
        %v1904 = vunpack.c.l.b16 %v1738
        %v1905 = vunpack.c.h.b16 %v1738
        %v1906 = vunpack.c.l.b16 %v1739
        %v1907 = vunpack.c.h.b16 %v1739
        %v1908 = vunpack.c.l.b16 %v1740
        %v1909 = vunpack.c.h.b16 %v1740
        %v1910 = vunpack.c.l.b16 %v1741
        %v1911 = vunpack.c.h.b16 %v1741
        %v1912 = vunpack.c.l.b16 %v1742
        %v1913 = vunpack.c.h.b16 %v1742
        %v1914 = vunpack.c.l.b16 %v1743
        %v1915 = vunpack.c.h.b16 %v1743
        %v1916 = vunpack.c.l.b16 %v1744
        %v1917 = vunpack.c.h.b16 %v1744
        %v1918 = vunpack.c.l.b16 %v1745
        %v1919 = vunpack.c.h.b16 %v1745
        %v1920 = vunpack.c.l.b16 %v1746
        %v1921 = vunpack.c.h.b16 %v1746
        %v1922 = vunpack.c.l.b16 %v1747
        %v1923 = vunpack.c.h.b16 %v1747
        %v1924 = vunpack.c.l.b16 %v1748
        %v1925 = vunpack.c.h.b16 %v1748
        %v1926 = vunpack.c.l.b16 %v1749
        %v1927 = vunpack.c.h.b16 %v1749
        %v1928 = vunpack.c.l.b16 %v1750
        %v1929 = vunpack.c.h.b16 %v1750
        %v1930 = vunpack.c.l.b16 %v1751
        %v1931 = vunpack.c.h.b16 %v1751
        %v1932 = vunpack.c.l.b16 %v1752
        %v1933 = vunpack.c.h.b16 %v1752
        %v1934 = vunpack.c.l.b16 %v1753
        %v1935 = vunpack.c.h.b16 %v1753
        %v1936 = vunpack.c.l.b16 %v1754
        %v1937 = vunpack.c.h.b16 %v1754
        %v1938 = vunpack.c.l.b16 %v1755
        %v1939 = vunpack.c.h.b16 %v1755
        %v1940 = vunpack.c.l.b16 %v1756
        %v1941 = vunpack.c.h.b16 %v1756
        %v1942 = vunpack.c.l.b16 %v1757
        %v1943 = vunpack.c.h.b16 %v1757
        %v1944 = vunpack.c.l.b16 %v1758
        %v1945 = vunpack.c.h.b16 %v1758
        %v1946 = vunpack.c.l.b16 %v1759
        %v1947 = vunpack.c.h.b16 %v1759
        %v1948 = vunpack.c.l.b16 %v1760
        %v1949 = vunpack.c.h.b16 %v1760
        %v1950 = vunpack.c.l.b16 %v1761
        %v1951 = vunpack.c.h.b16 %v1761
        %v1952 = vunpack.c.l.b16 %v1762
        %v1953 = vunpack.c.h.b16 %v1762
        %v1954 = vunpack.c.l.b16 %v1763
        %v1955 = vunpack.c.h.b16 %v1763
        %v1956 = vpack.c.b16 %v1830, %v1828
        %v1957 = vpack.c.b16 %v1831, %v1829
        %v1958 = vpack.c.b16 %v1834, %v1832
        %v1959 = vpack.c.b16 %v1835, %v1833
        %v1960 = vpack.c.b16 %v1838, %v1836
        %v1961 = vpack.c.b16 %v1839, %v1837
        %v1962 = vpack.c.b16 %v1842, %v1840
        %v1963 = vpack.c.b16 %v1843, %v1841
        %v1964 = vpack.c.b16 %v1846, %v1844
        %v1965 = vpack.c.b16 %v1847, %v1845
        %v1966 = vpack.c.b16 %v1850, %v1848
        %v1967 = vpack.c.b16 %v1851, %v1849
        %v1968 = vpack.c.b16 %v1854, %v1852
        %v1969 = vpack.c.b16 %v1855, %v1853
        %v1970 = vpack.c.b16 %v1858, %v1856
        %v1971 = vpack.c.b16 %v1859, %v1857
        %v1972 = vpack.c.b16 %v1862, %v1860
        %v1973 = vpack.c.b16 %v1863, %v1861
        %v1974 = vpack.c.b16 %v1866, %v1864
        %v1975 = vpack.c.b16 %v1867, %v1865
        %v1976 = vpack.c.b16 %v1870, %v1868
        %v1977 = vpack.c.b16 %v1871, %v1869
        %v1978 = vpack.c.b16 %v1874, %v1872
        %v1979 = vpack.c.b16 %v1875, %v1873
        %v1980 = vpack.c.b16 %v1878, %v1876
        %v1981 = vpack.c.b16 %v1879, %v1877
        %v1982 = vpack.c.b16 %v1882, %v1880
        %v1983 = vpack.c.b16 %v1883, %v1881
        %v1984 = vpack.c.b16 %v1886, %v1884
        %v1985 = vpack.c.b16 %v1887, %v1885
        %v1986 = vpack.c.b16 %v1890, %v1888
        %v1987 = vpack.c.b16 %v1891, %v1889
        %v1988 = vpack.c.b16 %v1894, %v1892
        %v1989 = vpack.c.b16 %v1895, %v1893
        %v1990 = vpack.c.b16 %v1898, %v1896
        %v1991 = vpack.c.b16 %v1899, %v1897
        %v1992 = vpack.c.b16 %v1902, %v1900
        %v1993 = vpack.c.b16 %v1903, %v1901
        %v1994 = vpack.c.b16 %v1906, %v1904
        %v1995 = vpack.c.b16 %v1907, %v1905
        %v1996 = vpack.c.b16 %v1910, %v1908
        %v1997 = vpack.c.b16 %v1911, %v1909
        %v1998 = vpack.c.b16 %v1914, %v1912
        %v1999 = vpack.c.b16 %v1915, %v1913
        %v2000 = vpack.c.b16 %v1918, %v1916
        %v2001 = vpack.c.b16 %v1919, %v1917
        %v2002 = vpack.c.b16 %v1922, %v1920
        %v2003 = vpack.c.b16 %v1923, %v1921
        %v2004 = vpack.c.b16 %v1926, %v1924
        %v2005 = vpack.c.b16 %v1927, %v1925
        %v2006 = vpack.c.b16 %v1930, %v1928
        %v2007 = vpack.c.b16 %v1931, %v1929
        %v2008 = vpack.c.b16 %v1934, %v1932
        %v2009 = vpack.c.b16 %v1935, %v1933
        %v2010 = vpack.c.b16 %v1938, %v1936
        %v2011 = vpack.c.b16 %v1939, %v1937
        %v2012 = vpack.c.b16 %v1942, %v1940
        %v2013 = vpack.c.b16 %v1943, %v1941
        %v2014 = vpack.c.b16 %v1946, %v1944
        %v2015 = vpack.c.b16 %v1947, %v1945
        %v2016 = vpack.c.b16 %v1950, %v1948
        %v2017 = vpack.c.b16 %v1951, %v1949
        %v2018 = vpack.c.b16 %v1954, %v1952
        %v2019 = vpack.c.b16 %v1955, %v1953
        %2084 = vmatprep.subr.bf16.mxu0 %v1957
        %2085 = vmatpush1.bf16.msra.mxu0 %v1956
        %2086 = vmatprep.subr.bf16.mxu0 %v1959
        %2087 = vmatpush1.bf16.msra.mxu0 %v1958
        %2088 = vmatprep.subr.bf16.mxu0 %v1961
        %2089 = vmatpush1.bf16.msra.mxu0 %v1960
        %2090 = vmatprep.subr.bf16.mxu0 %v1963
        %2091 = vmatpush1.bf16.msra.mxu0 %v1962
        %2092 = vmatprep.subr.bf16.mxu0 %v1965
        %2093 = vmatpush1.bf16.msra.mxu0 %v1964
        %2094 = vmatprep.subr.bf16.mxu0 %v1967
        %2095 = vmatpush1.bf16.msra.mxu0 %v1966
        %2096 = vmatprep.subr.bf16.mxu0 %v1969
        %2097 = vmatpush1.bf16.msra.mxu0 %v1968
        %2098 = vmatprep.subr.bf16.mxu0 %v1971
        %2099 = vmatpush1.bf16.msra.mxu0 %v1970
        %2100 = vmatprep.subr.bf16.mxu0 %v1973
        %2101 = vmatpush1.bf16.msra.mxu0 %v1972
        %2102 = vmatprep.subr.bf16.mxu0 %v1975
        %2103 = vmatpush1.bf16.msra.mxu0 %v1974
        %2104 = vmatprep.subr.bf16.mxu0 %v1977
        %2105 = vmatpush1.bf16.msra.mxu0 %v1976
        %2106 = vmatprep.subr.bf16.mxu0 %v1979
        %2107 = vmatpush1.bf16.msra.mxu0 %v1978
        %2108 = vmatprep.subr.bf16.mxu0 %v1981
        %2109 = vmatpush1.bf16.msra.mxu0 %v1980
        %2110 = vmatprep.subr.bf16.mxu0 %v1983
        %2111 = vmatpush1.bf16.msra.mxu0 %v1982
        %2112 = vmatprep.subr.bf16.mxu0 %v1985
        %2113 = vmatpush1.bf16.msra.mxu0 %v1984
        %2114 = vmatprep.subr.bf16.mxu0 %v1987
        %2115 = vmatpush1.bf16.msra.mxu0 %v1986
        %2116 = vmatprep.mubr.bf16.mxu0 %v1697
        %2117 = vmatmul.mubr.bf16.gmra.mrb[0].mxu0 %v1696
        %v2118 = vpop.f32.mrb[0].mxu0
        %v2119 = vadd.f32 0.0, %v2118
        %v2120 = vpop.f32.mrb[0].mxu0
        %v2121 = vadd.f32 0.0, %v2120
        %v2122 = vpop.f32.mrb[0].mxu0
        %v2123 = vpop.f32.mrb[0].mxu0
        %2124 = vdwg.mxu0
        %2125 = vmatprep.subr.bf16.mxu0 %v1989
        %2126 = vmatpush1.bf16.msra.mxu0 %v1988
        %2127 = vmatprep.subr.bf16.mxu0 %v1991
        %2128 = vmatpush1.bf16.msra.mxu0 %v1990
        %2129 = vmatprep.subr.bf16.mxu0 %v1993
        %2130 = vmatpush1.bf16.msra.mxu0 %v1992
        %2131 = vmatprep.subr.bf16.mxu0 %v1995
        %2132 = vmatpush1.bf16.msra.mxu0 %v1994
        %2133 = vmatprep.subr.bf16.mxu0 %v1997
        %2134 = vmatpush1.bf16.msra.mxu0 %v1996
        %2135 = vmatprep.subr.bf16.mxu0 %v1999
        %2136 = vmatpush1.bf16.msra.mxu0 %v1998
        %2137 = vmatprep.subr.bf16.mxu0 %v2001
        %2138 = vmatpush1.bf16.msra.mxu0 %v2000
        %2139 = vmatprep.subr.bf16.mxu0 %v2003
        %2140 = vmatpush1.bf16.msra.mxu0 %v2002
        %2141 = vmatprep.subr.bf16.mxu0 %v2005
        %2142 = vmatpush1.bf16.msra.mxu0 %v2004
        %2143 = vmatprep.subr.bf16.mxu0 %v2007
        %2144 = vmatpush1.bf16.msra.mxu0 %v2006
        %2145 = vmatprep.subr.bf16.mxu0 %v2009
        %2146 = vmatpush1.bf16.msra.mxu0 %v2008
        %2147 = vmatprep.subr.bf16.mxu0 %v2011
        %2148 = vmatpush1.bf16.msra.mxu0 %v2010
        %2149 = vmatprep.subr.bf16.mxu0 %v2013
        %2150 = vmatpush1.bf16.msra.mxu0 %v2012
        %2151 = vmatprep.subr.bf16.mxu0 %v2015
        %2152 = vmatpush1.bf16.msra.mxu0 %v2014
        %2153 = vmatprep.subr.bf16.mxu0 %v2017
        %2154 = vmatpush1.bf16.msra.mxu0 %v2016
        %2155 = vmatprep.subr.bf16.mxu0 %v2019
        %2156 = vmatpush1.bf16.msra.mxu0 %v2018
        %2157 = vmatprep.mubr.bf16.mxu0 %v1699
        %2158 = vmatmul.mubr.bf16.gmra.mrb[0].mxu0 %v1698
        %v2159 = vpop.f32.mrb[0].mxu0
        %v2160 = vadd.f32 %v2119, %v2159
        %v2161 = vpop.f32.mrb[0].mxu0
        %v2162 = vadd.f32 %v2121, %v2161
        %v2163 = vpop.f32.mrb[0].mxu0
        %v2164 = vpop.f32.mrb[0].mxu0
        %2165 = vdwg.mxu0
        %v2166 = vadd.f32 %v1599, %v2160
        %v2167 = vadd.f32 %v1601, %v2162
        %s2168 = scalar_lea.vmem %s283, 12 [#allocation2]
        %v2169 = vld [vmem:[%s2168] sm:$0xf]
        %v2171 = vsel %vm471, %v2169, 0
        %2173 = vmatprep.subr.bf16.mxu0 %v436
        %2174 = vmatpush1.bf16.msra.mxu0 %v435
        %2175 = vmatprep.subr.bf16.mxu0 %v440
        %2176 = vmatpush1.bf16.msra.mxu0 %v439
        %2177 = vmatprep.subr.bf16.mxu0 %v444
        %2178 = vmatpush1.bf16.msra.mxu0 %v443
        %2179 = vmatprep.subr.bf16.mxu0 %v448
        %2180 = vmatpush1.bf16.msra.mxu0 %v447
        %2181 = vmatprep.subr.bf16.mxu0 %v480
        %2182 = vmatpush1.bf16.msra.mxu0 %v477
        %2183 = vmatprep.subr.bf16.mxu0 0
        %2184 = vmatpush1.bf16.msra.mxu0 0
        %2185 = vmatprep.subr.bf16.mxu0 0
        %2186 = vmatpush1.bf16.msra.mxu0 0
        %2187 = vmatprep.subr.bf16.mxu0 0
        %2188 = vmatpush1.bf16.msra.mxu0 0
        %2189 = vmatprep.subr.bf16.mxu0 0
        %2190 = vmatpush1.bf16.msra.mxu0 0
        %2191 = vmatprep.subr.bf16.mxu0 0
        %2192 = vmatpush1.bf16.msra.mxu0 0
        %2193 = vmatprep.subr.bf16.mxu0 0
        %2194 = vmatpush1.bf16.msra.mxu0 0
        %2195 = vmatprep.subr.bf16.mxu0 0
        %2196 = vmatpush1.bf16.msra.mxu0 0
        %2197 = vmatprep.subr.bf16.mxu0 0
        %2198 = vmatpush1.bf16.msra.mxu0 0
        %2199 = vmatprep.subr.bf16.mxu0 0
        %2200 = vmatpush1.bf16.msra.mxu0 0
        %2201 = vmatprep.subr.bf16.mxu0 0
        %2202 = vmatpush1.bf16.msra.mxu0 0
        %2203 = vmatprep.subr.bf16.mxu0 0
        %2204 = vmatpush1.bf16.msra.mxu0 0
        %2205 = vmatprep.mubr.bf16.mxu0 0
        %2206 = vmatmul.mubr.bf16.gmra.mrb[0].mxu0 %v2171
        %v2207 = vpop.f32.mrb[0].mxu0
        %v2208 = vadd.f32 %v364, %v2207
        %v2209 = vpop.f32.mrb[0].mxu0
        %v2210 = vadd.f32 %v368, %v2209
        %v2211 = vpop.f32.mrb[0].mxu0
        %v2212 = vpop.f32.mrb[0].mxu0
        %2213 = vdwg.mxu0
        %2214 = vmatprep.subr.bf16.mxu0 %v438
        %2215 = vmatpush1.bf16.msra.mxu0 %v437
        %2216 = vmatprep.subr.bf16.mxu0 %v442
        %2217 = vmatpush1.bf16.msra.mxu0 %v441
        %2218 = vmatprep.subr.bf16.mxu0 %v446
        %2219 = vmatpush1.bf16.msra.mxu0 %v445
        %2220 = vmatprep.subr.bf16.mxu0 %v450
        %2221 = vmatpush1.bf16.msra.mxu0 %v449
        %2222 = vmatprep.subr.bf16.mxu0 %v486
        %2223 = vmatpush1.bf16.msra.mxu0 %v483
        %2224 = vmatprep.subr.bf16.mxu0 0
        %2225 = vmatpush1.bf16.msra.mxu0 0
        %2226 = vmatprep.subr.bf16.mxu0 0
        %2227 = vmatpush1.bf16.msra.mxu0 0
        %2228 = vmatprep.subr.bf16.mxu0 0
        %2229 = vmatpush1.bf16.msra.mxu0 0
        %2230 = vmatprep.subr.bf16.mxu0 0
        %2231 = vmatpush1.bf16.msra.mxu0 0
        %2232 = vmatprep.subr.bf16.mxu0 0
        %2233 = vmatpush1.bf16.msra.mxu0 0
        %2234 = vmatprep.subr.bf16.mxu0 0
        %2235 = vmatpush1.bf16.msra.mxu0 0
        %2236 = vmatprep.subr.bf16.mxu0 0
        %2237 = vmatpush1.bf16.msra.mxu0 0
        %2238 = vmatprep.subr.bf16.mxu0 0
        %2239 = vmatpush1.bf16.msra.mxu0 0
        %2240 = vmatprep.subr.bf16.mxu0 0
        %2241 = vmatpush1.bf16.msra.mxu0 0
        %2242 = vmatprep.subr.bf16.mxu0 0
        %2243 = vmatpush1.bf16.msra.mxu0 0
        %2244 = vmatprep.subr.bf16.mxu0 0
        %2245 = vmatpush1.bf16.msra.mxu0 0
        %2246 = vmatprep.mubr.bf16.mxu0 0
        %2247 = vmatmul.mubr.bf16.gmra.mrb[0].mxu0 %v2171
        %v2248 = vpop.f32.mrb[0].mxu0
        %v2249 = vadd.f32 %v372, %v2248
        %v2250 = vpop.f32.mrb[0].mxu0
        %v2251 = vadd.f32 %v376, %v2250
        %v2252 = vpop.f32.mrb[0].mxu0
        %v2253 = vpop.f32.mrb[0].mxu0
        %2254 = vdwg.mxu0
        %v2255 = vmax.f32 %v2208, 0.0
        %v2256 = vmax.f32 %v2210, 0.0
        %v2257 = vmax.f32 %v2249, 0.0
        %v2258 = vmax.f32 %v2251, 0.0
        %v2259 = vpack.c.bf16 %v2255, %v2255
        %v2260 = vpack.c.bf16 %v2256, %v2256
        %v2261 = vpack.c.bf16 %v2257, %v2257
        %v2262 = vpack.c.bf16 %v2258, %v2258
        %v2263 = vld [vmem:[%s300 + $0x600] sm:$0xff]
        %v2264 = vld [vmem:[%s300 + $0x608] sm:$0xff]
        %v2265 = vld [vmem:[%s300 + $0x610] sm:$0xff]
        %v2266 = vld [vmem:[%s300 + $0x618] sm:$0xff]
        %v2267 = vld [vmem:[%s300 + $0x620] sm:$0xff]
        %v2268 = vld [vmem:[%s300 + $0x628] sm:$0xff]
        %v2269 = vld [vmem:[%s300 + $0x630] sm:$0xff]
        %v2270 = vld [vmem:[%s300 + $0x638] sm:$0xff]
        %v2271 = vld [vmem:[%s300 + $0x640] sm:$0xff]
        %v2272 = vld [vmem:[%s300 + $0x648] sm:$0xff]
        %v2273 = vld [vmem:[%s300 + $0x650] sm:$0xff]
        %v2274 = vld [vmem:[%s300 + $0x658] sm:$0xff]
        %v2275 = vld [vmem:[%s300 + $0x660] sm:$0xff]
        %v2276 = vld [vmem:[%s300 + $0x668] sm:$0xff]
        %v2277 = vld [vmem:[%s300 + $0x670] sm:$0xff]
        %v2278 = vld [vmem:[%s300 + $0x678] sm:$0xff]
        %v2279 = vld [vmem:[%s300 + $0x680] sm:$0xff]
        %v2280 = vld [vmem:[%s300 + $0x688] sm:$0xff]
        %v2281 = vld [vmem:[%s300 + $0x690] sm:$0xff]
        %v2282 = vld [vmem:[%s300 + $0x698] sm:$0xff]
        %v2283 = vld [vmem:[%s300 + $0x6a0] sm:$0xff]
        %v2284 = vld [vmem:[%s300 + $0x6a8] sm:$0xff]
        %v2285 = vld [vmem:[%s300 + $0x6b0] sm:$0xff]
        %v2286 = vld [vmem:[%s300 + $0x6b8] sm:$0xff]
        %v2287 = vld [vmem:[%s300 + $0x6c0] sm:$0xff]
        %v2288 = vld [vmem:[%s300 + $0x6c8] sm:$0xff]
        %v2289 = vld [vmem:[%s300 + $0x6d0] sm:$0xff]
        %v2290 = vld [vmem:[%s300 + $0x6d8] sm:$0xff]
        %v2291 = vld [vmem:[%s300 + $0x6e0] sm:$0xff]
        %v2292 = vld [vmem:[%s300 + $0x6e8] sm:$0xff]
        %v2293 = vld [vmem:[%s300 + $0x6f0] sm:$0xff]
        %v2294 = vld [vmem:[%s300 + $0x6f8] sm:$0xff]
        %v2295 = vld [vmem:[%s300 + $0x700] sm:$0xff]
        %v2296 = vld [vmem:[%s300 + $0x708] sm:$0xff]
        %v2297 = vld [vmem:[%s300 + $0x710] sm:$0xff]
        %v2298 = vld [vmem:[%s300 + $0x718] sm:$0xff]
        %v2299 = vld [vmem:[%s300 + $0x720] sm:$0xff]
        %v2300 = vld [vmem:[%s300 + $0x728] sm:$0xff]
        %v2301 = vld [vmem:[%s300 + $0x730] sm:$0xff]
        %v2302 = vld [vmem:[%s300 + $0x738] sm:$0xff]
        %v2303 = vld [vmem:[%s300 + $0x740] sm:$0xff]
        %v2304 = vld [vmem:[%s300 + $0x748] sm:$0xff]
        %v2305 = vld [vmem:[%s300 + $0x750] sm:$0xff]
        %v2306 = vld [vmem:[%s300 + $0x758] sm:$0xff]
        %v2307 = vld [vmem:[%s300 + $0x760] sm:$0xff]
        %v2308 = vld [vmem:[%s300 + $0x768] sm:$0xff]
        %v2309 = vld [vmem:[%s300 + $0x770] sm:$0xff]
        %v2310 = vld [vmem:[%s300 + $0x778] sm:$0xff]
        %v2311 = vld [vmem:[%s300 + $0x780] sm:$0xff]
        %v2312 = vld [vmem:[%s300 + $0x788] sm:$0xff]
        %v2313 = vld [vmem:[%s300 + $0x790] sm:$0xff]
        %v2314 = vld [vmem:[%s300 + $0x798] sm:$0xff]
        %v2315 = vld [vmem:[%s300 + $0x7a0] sm:$0xff]
        %v2316 = vld [vmem:[%s300 + $0x7a8] sm:$0xff]
        %v2317 = vld [vmem:[%s300 + $0x7b0] sm:$0xff]
        %v2318 = vld [vmem:[%s300 + $0x7b8] sm:$0xff]
        %v2319 = vld [vmem:[%s300 + $0x7c0] sm:$0xff]
        %v2320 = vld [vmem:[%s300 + $0x7c8] sm:$0xff]
        %v2321 = vld [vmem:[%s300 + $0x7d0] sm:$0xff]
        %v2322 = vld [vmem:[%s300 + $0x7d8] sm:$0xff]
        %v2323 = vld [vmem:[%s300 + $0x7e0] sm:$0xff]
        %v2324 = vld [vmem:[%s300 + $0x7e8] sm:$0xff]
        %v2325 = vld [vmem:[%s300 + $0x7f0] sm:$0xff]
        %v2326 = vld [vmem:[%s300 + $0x7f8] sm:$0xff]
        %v2391 = vunpack.c.l.b16 %v2263
        %v2392 = vunpack.c.h.b16 %v2263
        %v2393 = vunpack.c.l.b16 %v2264
        %v2394 = vunpack.c.h.b16 %v2264
        %v2395 = vunpack.c.l.b16 %v2265
        %v2396 = vunpack.c.h.b16 %v2265
        %v2397 = vunpack.c.l.b16 %v2266
        %v2398 = vunpack.c.h.b16 %v2266
        %v2399 = vunpack.c.l.b16 %v2267
        %v2400 = vunpack.c.h.b16 %v2267
        %v2401 = vunpack.c.l.b16 %v2268
        %v2402 = vunpack.c.h.b16 %v2268
        %v2403 = vunpack.c.l.b16 %v2269
        %v2404 = vunpack.c.h.b16 %v2269
        %v2405 = vunpack.c.l.b16 %v2270
        %v2406 = vunpack.c.h.b16 %v2270
        %v2407 = vunpack.c.l.b16 %v2271
        %v2408 = vunpack.c.h.b16 %v2271
        %v2409 = vunpack.c.l.b16 %v2272
        %v2410 = vunpack.c.h.b16 %v2272
        %v2411 = vunpack.c.l.b16 %v2273
        %v2412 = vunpack.c.h.b16 %v2273
        %v2413 = vunpack.c.l.b16 %v2274
        %v2414 = vunpack.c.h.b16 %v2274
        %v2415 = vunpack.c.l.b16 %v2275
        %v2416 = vunpack.c.h.b16 %v2275
        %v2417 = vunpack.c.l.b16 %v2276
        %v2418 = vunpack.c.h.b16 %v2276
        %v2419 = vunpack.c.l.b16 %v2277
        %v2420 = vunpack.c.h.b16 %v2277
        %v2421 = vunpack.c.l.b16 %v2278
        %v2422 = vunpack.c.h.b16 %v2278
        %v2423 = vunpack.c.l.b16 %v2279
        %v2424 = vunpack.c.h.b16 %v2279
        %v2425 = vunpack.c.l.b16 %v2280
        %v2426 = vunpack.c.h.b16 %v2280
        %v2427 = vunpack.c.l.b16 %v2281
        %v2428 = vunpack.c.h.b16 %v2281
        %v2429 = vunpack.c.l.b16 %v2282
        %v2430 = vunpack.c.h.b16 %v2282
        %v2431 = vunpack.c.l.b16 %v2283
        %v2432 = vunpack.c.h.b16 %v2283
        %v2433 = vunpack.c.l.b16 %v2284
        %v2434 = vunpack.c.h.b16 %v2284
        %v2435 = vunpack.c.l.b16 %v2285
        %v2436 = vunpack.c.h.b16 %v2285
        %v2437 = vunpack.c.l.b16 %v2286
        %v2438 = vunpack.c.h.b16 %v2286
        %v2439 = vunpack.c.l.b16 %v2287
        %v2440 = vunpack.c.h.b16 %v2287
        %v2441 = vunpack.c.l.b16 %v2288
        %v2442 = vunpack.c.h.b16 %v2288
        %v2443 = vunpack.c.l.b16 %v2289
        %v2444 = vunpack.c.h.b16 %v2289
        %v2445 = vunpack.c.l.b16 %v2290
        %v2446 = vunpack.c.h.b16 %v2290
        %v2447 = vunpack.c.l.b16 %v2291
        %v2448 = vunpack.c.h.b16 %v2291
        %v2449 = vunpack.c.l.b16 %v2292
        %v2450 = vunpack.c.h.b16 %v2292
        %v2451 = vunpack.c.l.b16 %v2293
        %v2452 = vunpack.c.h.b16 %v2293
        %v2453 = vunpack.c.l.b16 %v2294
        %v2454 = vunpack.c.h.b16 %v2294
        %v2455 = vunpack.c.l.b16 %v2295
        %v2456 = vunpack.c.h.b16 %v2295
        %v2457 = vunpack.c.l.b16 %v2296
        %v2458 = vunpack.c.h.b16 %v2296
        %v2459 = vunpack.c.l.b16 %v2297
        %v2460 = vunpack.c.h.b16 %v2297
        %v2461 = vunpack.c.l.b16 %v2298
        %v2462 = vunpack.c.h.b16 %v2298
        %v2463 = vunpack.c.l.b16 %v2299
        %v2464 = vunpack.c.h.b16 %v2299
        %v2465 = vunpack.c.l.b16 %v2300
        %v2466 = vunpack.c.h.b16 %v2300
        %v2467 = vunpack.c.l.b16 %v2301
        %v2468 = vunpack.c.h.b16 %v2301
        %v2469 = vunpack.c.l.b16 %v2302
        %v2470 = vunpack.c.h.b16 %v2302
        %v2471 = vunpack.c.l.b16 %v2303
        %v2472 = vunpack.c.h.b16 %v2303
        %v2473 = vunpack.c.l.b16 %v2304
        %v2474 = vunpack.c.h.b16 %v2304
        %v2475 = vunpack.c.l.b16 %v2305
        %v2476 = vunpack.c.h.b16 %v2305
        %v2477 = vunpack.c.l.b16 %v2306
        %v2478 = vunpack.c.h.b16 %v2306
        %v2479 = vunpack.c.l.b16 %v2307
        %v2480 = vunpack.c.h.b16 %v2307
        %v2481 = vunpack.c.l.b16 %v2308
        %v2482 = vunpack.c.h.b16 %v2308
        %v2483 = vunpack.c.l.b16 %v2309
        %v2484 = vunpack.c.h.b16 %v2309
        %v2485 = vunpack.c.l.b16 %v2310
        %v2486 = vunpack.c.h.b16 %v2310
        %v2487 = vunpack.c.l.b16 %v2311
        %v2488 = vunpack.c.h.b16 %v2311
        %v2489 = vunpack.c.l.b16 %v2312
        %v2490 = vunpack.c.h.b16 %v2312
        %v2491 = vunpack.c.l.b16 %v2313
        %v2492 = vunpack.c.h.b16 %v2313
        %v2493 = vunpack.c.l.b16 %v2314
        %v2494 = vunpack.c.h.b16 %v2314
        %v2495 = vunpack.c.l.b16 %v2315
        %v2496 = vunpack.c.h.b16 %v2315
        %v2497 = vunpack.c.l.b16 %v2316
        %v2498 = vunpack.c.h.b16 %v2316
        %v2499 = vunpack.c.l.b16 %v2317
        %v2500 = vunpack.c.h.b16 %v2317
        %v2501 = vunpack.c.l.b16 %v2318
        %v2502 = vunpack.c.h.b16 %v2318
        %v2503 = vunpack.c.l.b16 %v2319
        %v2504 = vunpack.c.h.b16 %v2319
        %v2505 = vunpack.c.l.b16 %v2320
        %v2506 = vunpack.c.h.b16 %v2320
        %v2507 = vunpack.c.l.b16 %v2321
        %v2508 = vunpack.c.h.b16 %v2321
        %v2509 = vunpack.c.l.b16 %v2322
        %v2510 = vunpack.c.h.b16 %v2322
        %v2511 = vunpack.c.l.b16 %v2323
        %v2512 = vunpack.c.h.b16 %v2323
        %v2513 = vunpack.c.l.b16 %v2324
        %v2514 = vunpack.c.h.b16 %v2324
        %v2515 = vunpack.c.l.b16 %v2325
        %v2516 = vunpack.c.h.b16 %v2325
        %v2517 = vunpack.c.l.b16 %v2326
        %v2518 = vunpack.c.h.b16 %v2326
        %v2519 = vpack.c.b16 %v2393, %v2391
        %v2520 = vpack.c.b16 %v2394, %v2392
        %v2521 = vpack.c.b16 %v2397, %v2395
        %v2522 = vpack.c.b16 %v2398, %v2396
        %v2523 = vpack.c.b16 %v2401, %v2399
        %v2524 = vpack.c.b16 %v2402, %v2400
        %v2525 = vpack.c.b16 %v2405, %v2403
        %v2526 = vpack.c.b16 %v2406, %v2404
        %v2527 = vpack.c.b16 %v2409, %v2407
        %v2528 = vpack.c.b16 %v2410, %v2408
        %v2529 = vpack.c.b16 %v2413, %v2411
        %v2530 = vpack.c.b16 %v2414, %v2412
        %v2531 = vpack.c.b16 %v2417, %v2415
        %v2532 = vpack.c.b16 %v2418, %v2416
        %v2533 = vpack.c.b16 %v2421, %v2419
        %v2534 = vpack.c.b16 %v2422, %v2420
        %v2535 = vpack.c.b16 %v2425, %v2423
        %v2536 = vpack.c.b16 %v2426, %v2424
        %v2537 = vpack.c.b16 %v2429, %v2427
        %v2538 = vpack.c.b16 %v2430, %v2428
        %v2539 = vpack.c.b16 %v2433, %v2431
        %v2540 = vpack.c.b16 %v2434, %v2432
        %v2541 = vpack.c.b16 %v2437, %v2435
        %v2542 = vpack.c.b16 %v2438, %v2436
        %v2543 = vpack.c.b16 %v2441, %v2439
        %v2544 = vpack.c.b16 %v2442, %v2440
        %v2545 = vpack.c.b16 %v2445, %v2443
        %v2546 = vpack.c.b16 %v2446, %v2444
        %v2547 = vpack.c.b16 %v2449, %v2447
        %v2548 = vpack.c.b16 %v2450, %v2448
        %v2549 = vpack.c.b16 %v2453, %v2451
        %v2550 = vpack.c.b16 %v2454, %v2452
        %v2551 = vpack.c.b16 %v2457, %v2455
        %v2552 = vpack.c.b16 %v2458, %v2456
        %v2553 = vpack.c.b16 %v2461, %v2459
        %v2554 = vpack.c.b16 %v2462, %v2460
        %v2555 = vpack.c.b16 %v2465, %v2463
        %v2556 = vpack.c.b16 %v2466, %v2464
        %v2557 = vpack.c.b16 %v2469, %v2467
        %v2558 = vpack.c.b16 %v2470, %v2468
        %v2559 = vpack.c.b16 %v2473, %v2471
        %v2560 = vpack.c.b16 %v2474, %v2472
        %v2561 = vpack.c.b16 %v2477, %v2475
        %v2562 = vpack.c.b16 %v2478, %v2476
        %v2563 = vpack.c.b16 %v2481, %v2479
        %v2564 = vpack.c.b16 %v2482, %v2480
        %v2565 = vpack.c.b16 %v2485, %v2483
        %v2566 = vpack.c.b16 %v2486, %v2484
        %v2567 = vpack.c.b16 %v2489, %v2487
        %v2568 = vpack.c.b16 %v2490, %v2488
        %v2569 = vpack.c.b16 %v2493, %v2491
        %v2570 = vpack.c.b16 %v2494, %v2492
        %v2571 = vpack.c.b16 %v2497, %v2495
        %v2572 = vpack.c.b16 %v2498, %v2496
        %v2573 = vpack.c.b16 %v2501, %v2499
        %v2574 = vpack.c.b16 %v2502, %v2500
        %v2575 = vpack.c.b16 %v2505, %v2503
        %v2576 = vpack.c.b16 %v2506, %v2504
        %v2577 = vpack.c.b16 %v2509, %v2507
        %v2578 = vpack.c.b16 %v2510, %v2508
        %v2579 = vpack.c.b16 %v2513, %v2511
        %v2580 = vpack.c.b16 %v2514, %v2512
        %v2581 = vpack.c.b16 %v2517, %v2515
        %v2582 = vpack.c.b16 %v2518, %v2516
        %2647 = vmatprep.subr.bf16.mxu0 %v2520
        %2648 = vmatpush1.bf16.msra.mxu0 %v2519
        %2649 = vmatprep.subr.bf16.mxu0 %v2522
        %2650 = vmatpush1.bf16.msra.mxu0 %v2521
        %2651 = vmatprep.subr.bf16.mxu0 %v2524
        %2652 = vmatpush1.bf16.msra.mxu0 %v2523
        %2653 = vmatprep.subr.bf16.mxu0 %v2526
        %2654 = vmatpush1.bf16.msra.mxu0 %v2525
        %2655 = vmatprep.subr.bf16.mxu0 %v2528
        %2656 = vmatpush1.bf16.msra.mxu0 %v2527
        %2657 = vmatprep.subr.bf16.mxu0 %v2530
        %2658 = vmatpush1.bf16.msra.mxu0 %v2529
        %2659 = vmatprep.subr.bf16.mxu0 %v2532
        %2660 = vmatpush1.bf16.msra.mxu0 %v2531
        %2661 = vmatprep.subr.bf16.mxu0 %v2534
        %2662 = vmatpush1.bf16.msra.mxu0 %v2533
        %2663 = vmatprep.subr.bf16.mxu0 %v2536
        %2664 = vmatpush1.bf16.msra.mxu0 %v2535
        %2665 = vmatprep.subr.bf16.mxu0 %v2538
        %2666 = vmatpush1.bf16.msra.mxu0 %v2537
        %2667 = vmatprep.subr.bf16.mxu0 %v2540
        %2668 = vmatpush1.bf16.msra.mxu0 %v2539
        %2669 = vmatprep.subr.bf16.mxu0 %v2542
        %2670 = vmatpush1.bf16.msra.mxu0 %v2541
        %2671 = vmatprep.subr.bf16.mxu0 %v2544
        %2672 = vmatpush1.bf16.msra.mxu0 %v2543
        %2673 = vmatprep.subr.bf16.mxu0 %v2546
        %2674 = vmatpush1.bf16.msra.mxu0 %v2545
        %2675 = vmatprep.subr.bf16.mxu0 %v2548
        %2676 = vmatpush1.bf16.msra.mxu0 %v2547
        %2677 = vmatprep.subr.bf16.mxu0 %v2550
        %2678 = vmatpush1.bf16.msra.mxu0 %v2549
        %2679 = vmatprep.mubr.bf16.mxu0 %v2260
        %2680 = vmatmul.mubr.bf16.gmra.mrb[0].mxu0 %v2259
        %v2681 = vpop.f32.mrb[0].mxu0
        %v2682 = vadd.f32 0.0, %v2681
        %v2683 = vpop.f32.mrb[0].mxu0
        %v2684 = vadd.f32 0.0, %v2683
        %v2685 = vpop.f32.mrb[0].mxu0
        %v2686 = vpop.f32.mrb[0].mxu0
        %2687 = vdwg.mxu0
        %2688 = vmatprep.subr.bf16.mxu0 %v2552
        %2689 = vmatpush1.bf16.msra.mxu0 %v2551
        %2690 = vmatprep.subr.bf16.mxu0 %v2554
        %2691 = vmatpush1.bf16.msra.mxu0 %v2553
        %2692 = vmatprep.subr.bf16.mxu0 %v2556
        %2693 = vmatpush1.bf16.msra.mxu0 %v2555
        %2694 = vmatprep.subr.bf16.mxu0 %v2558
        %2695 = vmatpush1.bf16.msra.mxu0 %v2557
        %2696 = vmatprep.subr.bf16.mxu0 %v2560
        %2697 = vmatpush1.bf16.msra.mxu0 %v2559
        %2698 = vmatprep.subr.bf16.mxu0 %v2562
        %2699 = vmatpush1.bf16.msra.mxu0 %v2561
        %2700 = vmatprep.subr.bf16.mxu0 %v2564
        %2701 = vmatpush1.bf16.msra.mxu0 %v2563
        %2702 = vmatprep.subr.bf16.mxu0 %v2566
        %2703 = vmatpush1.bf16.msra.mxu0 %v2565
        %2704 = vmatprep.subr.bf16.mxu0 %v2568
        %2705 = vmatpush1.bf16.msra.mxu0 %v2567
        %2706 = vmatprep.subr.bf16.mxu0 %v2570
        %2707 = vmatpush1.bf16.msra.mxu0 %v2569
        %2708 = vmatprep.subr.bf16.mxu0 %v2572
        %2709 = vmatpush1.bf16.msra.mxu0 %v2571
        %2710 = vmatprep.subr.bf16.mxu0 %v2574
        %2711 = vmatpush1.bf16.msra.mxu0 %v2573
        %2712 = vmatprep.subr.bf16.mxu0 %v2576
        %2713 = vmatpush1.bf16.msra.mxu0 %v2575
        %2714 = vmatprep.subr.bf16.mxu0 %v2578
        %2715 = vmatpush1.bf16.msra.mxu0 %v2577
        %2716 = vmatprep.subr.bf16.mxu0 %v2580
        %2717 = vmatpush1.bf16.msra.mxu0 %v2579
        %2718 = vmatprep.subr.bf16.mxu0 %v2582
        %2719 = vmatpush1.bf16.msra.mxu0 %v2581
        %2720 = vmatprep.mubr.bf16.mxu0 %v2262
        %2721 = vmatmul.mubr.bf16.gmra.mrb[0].mxu0 %v2261
        %v2722 = vpop.f32.mrb[0].mxu0
        %v2723 = vadd.f32 %v2682, %v2722
        %v2724 = vpop.f32.mrb[0].mxu0
        %v2725 = vadd.f32 %v2684, %v2724
        %v2726 = vpop.f32.mrb[0].mxu0
        %v2727 = vpop.f32.mrb[0].mxu0
        %2728 = vdwg.mxu0
        %v2729 = vadd.f32 %v2166, %v2723
        %v2730 = vadd.f32 %v2167, %v2725
        %v2731 = vld [vmem:[#allocation11] sm:$0xff]
        %v2732 = vld [vmem:[#allocation11 + $0x8] sm:$0xff]
        %v2733 = vadd.f32 %v2731, %v2729
        %v2734 = vadd.f32 %v2732, %v2730
        %2735 = vst [vmem:[#allocation11] sm:$0xff] %v2733
        %2736 = vst [vmem:[#allocation11 + $0x8] sm:$0xff] %v2734
        %p2737 = scmp.eq.s32.totalorder %s29, 8
        // Predicated region
        $region65: #{tpu_custom_call.1} parent=39 // pred_check
          %p2738 = pneg %p2737
        $region66: #{tpu_custom_call.1} parent=39 // pred_check_branch
          %2740 = sbr.rel (%p2738) target = $region68
        $region67: #{tpu_custom_call.1} parent=39 // pred_region
          %v2741 = vld [vmem:[#allocation11] sm:$0xff]
          %v2742 = vld [vmem:[#allocation11 + $0x8] sm:$0xff]
          %v2743 = vld [vmem:[#allocation10] sm:$0x3]
          %v2745 = vlaneseq
          %v2746 = vshrl.u32 %v2745, 7
          %v2747 = vsub.s32 0, %v2746
          %v2748 = vrot.slane %v2743, %v2747
          %v2749 = vlaneseq
          %v2750 = vshrl.u32 %v2749, 7
          %v2751 = vsub.s32 1, %v2750
          %v2752 = vrot.slane %v2743, %v2751
          %v2755 = vadd.f32 %v2741, %v2748
          %v2756 = vadd.f32 %v2742, %v2752
          %v2757 = vmax.f32 %v2755, 0.0
          %v2758 = vmax.f32 %v2756, 0.0
          %2759 = vst [vmem:[#allocation11] sm:$0xff] %v2757
          %2760 = vst [vmem:[#allocation11 + $0x8] sm:$0xff] %v2758
        $region68: #{tpu_custom_call.1} parent=39 // pred_fallthru
          _
        // Predicated region
        $region69: #{tpu_custom_call.1} parent=39 // pred_check
          %p2761 = pneg %p171
        $region70: #{tpu_custom_call.1} parent=39 // pred_check_branch
          %2763 = sbr.rel (%p2761) target = $region72
        $region71: #{tpu_custom_call.1} parent=39 // pred_region
          %s2765 = ssub.s32 256, 256
          %2766 = vsyncadd [#allocation4], %s2765
          %s2767 = smul.addr %s28, 2
          %s2768 = smul.addr %s2767, 128
          %s2769 = scalar_lea.hbm %s5, %s2768
          %s2771 = sshll.u32 [#allocation11], 4
          %s2772 = int_to_ptr.vmem [resolvable:$true] %s2771
          %2774 = dma.vmem_to_hbm [thread:$0]  %s2772, 256, %s2769, [#allocation4]
        $region72: #{tpu_custom_call.1} parent=39 // pred_fallthru
          _
        // Predicated region
        $region73: #{tpu_custom_call.1} parent=39 // pred_check
          %p2775 = pneg %p171
        $region74: #{tpu_custom_call.1} parent=39 // pred_check_branch
          %2777 = sbr.rel (%p2775) target = $region76
        $region75: #{tpu_custom_call.1} parent=39 // pred_region
          %2778 = dma.done [#allocation4], 256
        $region76: #{tpu_custom_call.1} parent=39 // pred_fallthru
          _
      $region40: #{tpu_custom_call.1} parent=5 // pred_fallthru
        _
      %p2779 = scmp.le.s32.totalorder 2, %s19
      // Predicated region
      $region77: #{tpu_custom_call.1} parent=5 // pred_check
        %p2780 = pneg %p2779
      $region78: #{tpu_custom_call.1} parent=5 // pred_check_branch
        %2782 = sbr.rel (%p2780) target = $region80
      $region79: #{tpu_custom_call.1} parent=5 // pred_region
        %s2783 = ssub.s32 %s19, 2
      $region80: #{tpu_custom_call.1} parent=5 // pred_fallthru
        _
    $region6: #{tpu_custom_call.1} parent=1 // loop_footer
      %s23 = sadd.s32 1, %s19
    $region7: #{tpu_custom_call.1} parent=1 // loop_footer_branch
      %18 = sbr.rel target = $region3
    $region8: #{tpu_custom_call.1} parent=1 // loop_exit
      _
    %2784 = vsyncpa [#allocation3], 1
    %s2785 = scalar_lea.sflag [#allocation3], 1
    %2786 = vsyncpa %s2785, 1
    %2787 = vsyncpa [#allocation6], 1
    %2788 = vsyncpa [#allocation9], 1
    %s2789 = scalar_lea.sflag [#allocation9], 1
    %2790 = vsyncpa %s2789, 1
    %2791 = vsyncpa [#allocation4], 1
    %s2792 = scalar_lea.sflag [#allocation4], 1
    %2793 = vsyncpa %s2792, 1

</llo_original>
